<compile_context>
chip_gen: v6e
topology: v6e:2x2x1
jax: 0.10.0
libtpu: 0.0.40
codegen_flags: <defaults>
</compile_context>

<pallas_src>
from functools import partial

import jax
import jax.numpy as jnp
from jax import lax
from jax.experimental import pallas as pl
from jax.experimental.pallas import tpu as pltpu

LANE = 128   # vreg lane width
TB = 8       # samples per grid step (= sublane tile -> full, unmasked output rows)


def _round_up(n, m):
    return (n + m - 1) // m * m


# ----------------------------------------------------------------------------
# Fused kernel.  Grid = (batch blocks, HW tiles).  Per step:
#   im2col patch tile -> conv for ALL tasks (one MXU matmul) -> ReLU -> bf16
#   -> partial GAP via block-diagonal pooling matmul -> f32 VMEM accumulator.
# At the last HW tile: one merged head matmul (classifier | aux | identity)
# and one lane-dense output store.
# ----------------------------------------------------------------------------
def _fused_forward_kernel(patches_ref, pool_ref, wconv_ref, whead_ref,
                          out_ref, acc_ref):
    # patches_ref: (TB, thw, K)        bf16  im2col tile (K = 9*Cin)
    # pool_ref   : (TB, TB*thw)        bf16  block-diag pooling matrix, 1/HW folded
    # wconv_ref  : (K, Cpad)           bf16  all tasks' conv filters, Cout-concat
    # whead_ref  : (Cpad, HeadPad)     bf16  [clf^T | aux^T | I_Cpad]
    # out_ref    : (TB, HeadPad)       f32   merged head output slab
    # acc_ref    : (TB, Cpad)          f32   pooled-feature accumulator (scratch)
    h = pl.program_id(1)

    @pl.when(h == 0)
    def _init():
        acc_ref[...] = jnp.zeros_like(acc_ref)

    tb, thw, k = patches_ref.shape
    patches = patches_ref[...].reshape(tb * thw, k)                     # bf16

    # 3x3 conv for every task and every sample in the block: one MXU matmul.
    act = jnp.dot(patches, wconv_ref[...],
                  preferred_element_type=jnp.float32)                   # (TB*thw, Cpad)
    act = jnp.maximum(act, 0.0).astype(jnp.bfloat16)                    # ReLU -> bf16

    # Partial global-average-pool: bf16 x bf16 matmul, f32 accumulate.
    acc_ref[...] += jnp.dot(pool_ref[...], act,
                            preferred_element_type=jnp.float32)         # (TB, Cpad)

    @pl.when(h == pl.num_programs(1) - 1)
    def _finalize():
        pooled_bf = acc_ref[...].astype(jnp.bfloat16)                   # (TB, Cpad)
        # One merged head matmul; padded feature columns are exactly zero, so
        # the row-embedded aux weight equals slicing the current task features.
        out_ref[...] = jnp.dot(pooled_bf, whead_ref[...],
                               preferred_element_type=jnp.float32)


# ----------------------------------------------------------------------------
# Wrapper glue
# ----------------------------------------------------------------------------
def _im2col_3x3(x_nhwc):
    """(B,H,W,Cin) -> (B, H*W, 9*Cin) patches for a 3x3 / stride-1 / pad-1 conv."""
    B, H, W, Cin = x_nhwc.shape
    xp = jnp.pad(x_nhwc, ((0, 0), (1, 1), (1, 1), (0, 0)))
    taps = [xp[:, dy:dy + H, dx:dx + W, :] for dy in range(3) for dx in range(3)]
    return jnp.concatenate(taps, axis=-1).reshape(B, H * W, 9 * Cin)


def _pick_hw_tile(hw, k, budget_bytes=8 << 20):
    """Largest HW tile (full extent, or a multiple-of-8 divisor of HW) whose
    bf16 patch tile fits the per-buffer budget (sized for v7x's 64 MiB VMEM)."""
    if TB * hw * k * 2 <= budget_bytes:
        return hw
    best = None
    for cand in range(8, hw, 8):
        if hw % cand == 0 and TB * cand * k * 2 <= budget_bytes:
            best = cand
    return best if best is not None else hw


def _forward_impl(params, x_nchw, *, feature_sizes, n_classes, task_size,
                  task_order, hw_tile=None):
    del task_order  # aux offset is baked into the packed head weight
    B, _, H, W = x_nchw.shape
    HW = H * W

    x = jnp.transpose(x_nchw, (0, 2, 3, 1))                 # NCHW -> NHWC
    patches = _im2col_3x3(x).astype(jnp.bfloat16)           # (B, HW, K)
    K = patches.shape[-1]

    # Pad batch so every grid step carries TB full sublane rows.
    Bpad = _round_up(max(B, TB), TB)
    if Bpad != B:
        patches = jnp.pad(patches, ((0, Bpad - B), (0, 0), (0, 0)))

    if hw_tile is None:
        hw_tile = _pick_hw_tile(HW, K)
    if HW % hw_tile != 0:
        hw_tile = HW
    n_hw = HW // hw_tile

    wconv = params["wconv_cat"]                              # (K, Cpad)      bf16
    whead = params["whead_t"]                                # (Cpad, HeadPad) bf16
    Cpad, HeadPad = whead.shape

    out_dim = sum(feature_sizes)
    npad = _round_up(max(n_classes, LANE), LANE)
    naux = task_size + 1
    naux_pad = _round_up(max(naux, LANE), LANE)
    assert HeadPad == npad + naux_pad + Cpad

    # Block-diagonal pooling matrix with 1/(H*W) folded in (resident input).
    col_owner = jnp.arange(TB * hw_tile) // hw_tile
    pool_mat = ((jnp.arange(TB)[:, None] == col_owner[None, :])
                .astype(jnp.float32) / HW).astype(jnp.bfloat16)          # (TB, TB*thw)

    # Explicit VMEM budget: double-buffered tiles + resident weights + scratch.
    vmem_bytes = (2 * TB * hw_tile * K * 2          # patch tiles (bf16, x2 buffers)
                  + 2 * TB * TB * hw_tile * 2       # pooling matrix
                  + 2 * K * Cpad * 2                # conv weights
                  + 2 * Cpad * HeadPad * 2          # head weights
                  + 2 * TB * HeadPad * 4            # output blocks
                  + TB * Cpad * 4                   # accumulator scratch
                  + 4 * TB * hw_tile * Cpad)        # activation working set
    vmem_limit = min(max(2 * vmem_bytes, 32 << 20), 100 << 20)

    head = pl.pallas_call(
        _fused_forward_kernel,
        grid=(Bpad // TB, n_hw),
        out_shape=jax.ShapeDtypeStruct((Bpad, HeadPad), jnp.float32),
        in_specs=[
            pl.BlockSpec((TB, hw_tile, K), lambda b, h: (b, h, 0)),
            pl.BlockSpec((TB, TB * hw_tile), lambda b, h: (0, 0)),
            pl.BlockSpec((K, Cpad), lambda b, h: (0, 0)),
            pl.BlockSpec((Cpad, HeadPad), lambda b, h: (0, 0)),
        ],
        out_specs=pl.BlockSpec((TB, HeadPad), lambda b, h: (b, 0)),
        scratch_shapes=[pltpu.VMEM((TB, Cpad), jnp.float32)],
        compiler_params=pltpu.CompilerParams(
            dimension_semantics=("parallel", "arbitrary"),
            vmem_limit_bytes=int(vmem_limit)),
    )(patches, pool_mat, wconv, whead)

    # Un-pad / split (cheap XLA glue on tiny tensors).
    output = head[:B, :n_classes]
    aux_logits = head[:B, npad:npad + naux]
    feats_full = head[:B, npad + naux_pad:npad + naux_pad + out_dim]
    features, off = [], 0
    for fs in feature_sizes:
        features.append(feats_full[:, off:off + fs])
        off += fs

    return {
        "feature": features,
        "output": output,
        "nout": None,          # taxonomy is None branch
        "sfmx_base": None,
        "aux_logit": aux_logits,
    }


tax_connection_der_forward = jax.jit(
    _forward_impl,
    static_argnames=("feature_sizes", "n_classes", "task_size", "task_order",
                     "hw_tile"))


# ----------------------------------------------------------------------------
# Parameter construction (synthetic, mirrors __init__ / new_task shapes).
# Weights are pre-transposed / zero-padded / concatenated ONCE here, so the
# forward pass never transposes, pads, or concatenates weights.
# ----------------------------------------------------------------------------
def build_params(key, *, c_in, feature_sizes, n_classes, task_size, task_order):
    n_tasks = len(feature_sizes)
    keys = jax.random.split(key, n_tasks + 2)
    K = 9 * c_in
    out_dim = sum(feature_sizes)                  # self.out_dim = sum(feature_size)
    cpad = _round_up(max(out_dim, LANE), LANE)
    npad = _round_up(max(n_classes, LANE), LANE)
    naux = task_size + 1                          # aux_n+1 head
    naux_pad = _round_up(max(naux, LANE), LANE)
    ct_fs = feature_sizes[task_order]
    task_off = sum(feature_sizes[:task_order])

    # Per-task backbone stand-in conv weights (He init with ReLU gain).
    conv_ws = [
        jax.random.normal(keys[t], (3, 3, c_in, fs), jnp.float32)
        * jnp.sqrt(2.0 / K)
        for t, fs in enumerate(feature_sizes)
    ]

    # classifier: nn.Linear(out_dim, n_classes, bias=False);
    # kaiming_normal_(nonlinearity='linear') -> std = 1/sqrt(fan_in)
    clf_w = (jax.random.normal(keys[-2], (n_classes, out_dim), jnp.float32)
             / jnp.sqrt(out_dim))
    # aux head: nn.Linear(ct_fs, task_size + 1, bias=False), same init.
    aux_w = (jax.random.normal(keys[-1], (naux, ct_fs), jnp.float32)
             / jnp.sqrt(ct_fs))

    # ---- pack for the fused kernel: pre-transposed, lane padded, bf16 ----
    wconv_cat = jnp.concatenate(
        [w.reshape(K, fs) for w, fs in zip(conv_ws, feature_sizes)], axis=-1)
    wconv_cat = jnp.pad(wconv_cat, ((0, 0), (0, cpad - out_dim)))
    wconv_cat = wconv_cat.astype(jnp.bfloat16)                       # (K, Cpad)

    # Merged head weight: [ classifier^T | aux^T (row-embedded) | I_Cpad ].
    # Padded pooled columns are exactly zero (zero wconv columns + ReLU(0)=0),
    # so the row-embedded aux block equals slicing features[task_order].
    whead = jnp.zeros((cpad, npad + naux_pad + cpad), jnp.float32)
    whead = whead.at[:out_dim, :n_classes].set(clf_w.T)
    whead = whead.at[task_off:task_off + ct_fs, npad:npad + naux].set(aux_w.T)
    whead = whead.at[:, npad + naux_pad:].set(jnp.eye(cpad, dtype=jnp.float32))
    whead = whead.astype(jnp.bfloat16)                               # (Cpad, HeadPad)

    return {
        "wconv_cat": wconv_cat, "whead_t": whead,
        # f32 originals kept only for the pure-JAX reference check
        "ref_conv_ws": conv_ws, "ref_clf_w": clf_w, "ref_aux_w": aux_w,
    }


# ----------------------------------------------------------------------------
# Pure-JAX f32 reference (for correctness check vs the bf16 kernel).
# ----------------------------------------------------------------------------
def reference_forward(params, x_nchw, *, task_order):
    x = jnp.transpose(x_nchw, (0, 2, 3, 1)).astype(jnp.float32)
    feats = []
    for w in params["ref_conv_ws"]:
        y = lax.conv_general_dilated(
            x, w, window_strides=(1, 1), padding="SAME",
            dimension_numbers=("NHWC", "HWIO", "NHWC"))
        y = jnp.maximum(y, 0.0)
        feats.append(jnp.mean(y, axis=(1, 2)))
    feats_full = jnp.concatenate(feats, axis=-1)
    output = feats_full @ params["ref_clf_w"].T
    aux = feats[task_order] @ params["ref_aux_w"].T
    return feats, output, aux


if __name__ == "__main__":
    key = jax.random.PRNGKey(0)
    k_x, k_p = jax.random.split(key)

    # Small shapes consistent with the module: cifar-like input, 2 DER tasks.
    B, C_in, H, W = 2, 4, 16, 16
    feature_sizes = (16, 16)     # at_info['feature_size'] per task
    n_classes = 10               # total classes so far
    task_size = 5                # current task size (aux head -> task_size + 1)
    task_order = 1               # current_task > 0 -> aux head is active

    x = jax.random.normal(k_x, (B, C_in, H, W), jnp.float32)   # NCHW, like PyTorch
    params = build_params(
        k_p, c_in=C_in, feature_sizes=feature_sizes,
        n_classes=n_classes, task_size=task_size, task_order=task_order)

    # hw_tile=128 splits HW=256 into 2 reduction steps, exercising the
    # accumulate-across-HW path; default (None) auto-picks the largest tile.
    out = tax_connection_der_forward(
        params, x, feature_sizes=feature_sizes, n_classes=n_classes,
        task_size=task_size, task_order=task_order, hw_tile=128)
    out = jax.block_until_ready(out)

    # Shape checks (match the PyTorch forward's return dict).
    assert out["output"].shape == (B, n_classes)
    assert out["aux_logit"].shape == (B, task_size + 1)
    assert len(out["feature"]) == len(feature_sizes)
    assert all(f.shape == (B, fs) for f, fs in zip(out["feature"], feature_sizes))
    assert out["nout"] is None and out["sfmx_base"] is None

    # Numerical check vs f32 reference (bf16 MXU operands -> loose tolerance).
    ref_feats, ref_out, ref_aux = reference_forward(params, x, task_order=task_order)
    assert jnp.allclose(out["output"], ref_out, atol=5e-2, rtol=1e-1)
    assert jnp.allclose(out["aux_logit"], ref_aux, atol=5e-2, rtol=1e-1)
    for f, rf in zip(out["feature"], ref_feats):
        assert jnp.allclose(f, rf, atol=5e-2, rtol=1e-1)

    print("KERNEL_OK")
</pallas_src>

<mosaic_0001>
module attributes {stable_mosaic.version = 11 : i64} {
  func.func @_fused_forward_kernel(%arg0: i32, %arg1: i32, %arg2: memref<8x128x36xbf16, #tpu.memory_space<vmem>>, %arg3: memref<8x1024xbf16, #tpu.memory_space<vmem>>, %arg4: memref<36x128xbf16, #tpu.memory_space<vmem>>, %arg5: memref<128x384xbf16, #tpu.memory_space<vmem>>, %arg6: memref<8x384xf32, #tpu.memory_space<vmem>>, %arg7: memref<8x128xf32, #tpu.memory_space<vmem>>) attributes {dimension_semantics = [#tpu.dimension_semantics<parallel>, #tpu.dimension_semantics<arbitrary>], iteration_bounds = array<i64: 1, 2>, scalar_prefetch = 0 : i64, scratch_operands = 1 : i64, tpu.core_type = #tpu.core_type<tc>, window_params = [{transform_indices = @transform_0, window_bounds = array<i64: 8, 128, 36>}, {pipeline_mode = #tpu.pipeline_mode<synchronous>, transform_indices = @transform_1, window_bounds = array<i64: 8, 1024>}, {pipeline_mode = #tpu.pipeline_mode<synchronous>, transform_indices = @transform_2, window_bounds = array<i64: 36, 128>}, {pipeline_mode = #tpu.pipeline_mode<synchronous>, transform_indices = @transform_3, window_bounds = array<i64: 128, 384>}, {transform_indices = @transform_4, window_bounds = array<i64: 8, 384>}]} {
    %c0_i32 = arith.constant 0 : i32
    %0 = arith.cmpi eq, %arg1, %c0_i32 : i32
    %1 = arith.extui %0 : i1 to i32
    %c0_i32_0 = arith.constant 0 : i32
    %2 = arith.cmpi ne, %1, %c0_i32_0 : i32
    scf.if %2 {
      %cst_14 = arith.constant 0.000000e+00 : f32
      %18 = vector.broadcast %cst_14 : f32 to vector<8x128xf32>
      %c0_15 = arith.constant 0 : index
      %c0_16 = arith.constant 0 : index
      %19 = vector.load %arg7[%c0_15, %c0_16] : memref<8x128xf32, #tpu.memory_space<vmem>>, vector<8x128xf32>
      tpu.vector_store %arg7[%c0_15, %c0_16], %18 {strides = array<i32>} : memref<8x128xf32, #tpu.memory_space<vmem>>, vector<8x128xf32>,
    } else {
    }
    %c0 = arith.constant 0 : index
    %c0_1 = arith.constant 0 : index
    %c0_2 = arith.constant 0 : index
    %3 = vector.load %arg2[%c0, %c0_1, %c0_2] : memref<8x128x36xbf16, #tpu.memory_space<vmem>>, vector<8x128x36xbf16>
    %4 = vector.shape_cast %3 : vector<8x128x36xbf16> to vector<1024x36xbf16>
    %c0_3 = arith.constant 0 : index
    %c0_4 = arith.constant 0 : index
    %5 = vector.load %arg4[%c0_3, %c0_4] : memref<36x128xbf16, #tpu.memory_space<vmem>>, vector<36x128xbf16>
    %cst = arith.constant dense<0.000000e+00> : vector<1024x128xf32>
    %6 = tpu.matmul %4, %5, %cst {dimension_numbers = #tpu.dot_dimension_numbers<[1], [0], [0], [1], [0, 0, 1, 1], [], []>} : vector<1024x36xbf16>, vector<36x128xbf16>, vector<1024x128xf32> -> vector<1024x128xf32>
    %cst_5 = arith.constant 0.000000e+00 : f32
    %7 = vector.broadcast %cst_5 : f32 to vector<1024x128xf32>
    %8 = arith.maximumf %6, %7 : vector<1024x128xf32>
    %9 = arith.truncf %8 : vector<1024x128xf32> to vector<1024x128xbf16>
    %c0_6 = arith.constant 0 : index
    %c0_7 = arith.constant 0 : index
    %10 = vector.load %arg7[%c0_6, %c0_7] : memref<8x128xf32, #tpu.memory_space<vmem>>, vector<8x128xf32>
    %c0_8 = arith.constant 0 : index
    %c0_9 = arith.constant 0 : index
    %11 = vector.load %arg3[%c0_8, %c0_9] : memref<8x1024xbf16, #tpu.memory_space<vmem>>, vector<8x1024xbf16>
    %cst_10 = arith.constant dense<0.000000e+00> : vector<8x128xf32>
    %12 = tpu.matmul %11, %9, %cst_10 {dimension_numbers = #tpu.dot_dimension_numbers<[1], [0], [0], [1], [0, 0, 1, 1], [], []>} : vector<8x1024xbf16>, vector<1024x128xbf16>, vector<8x128xf32> -> vector<8x128xf32>
    %13 = arith.addf %10, %12 : vector<8x128xf32>
    %c0_11 = arith.constant 0 : index
    %c0_12 = arith.constant 0 : index
    %14 = vector.load %arg7[%c0_11, %c0_12] : memref<8x128xf32, #tpu.memory_space<vmem>>, vector<8x128xf32>
    tpu.vector_store %arg7[%c0_11, %c0_12], %13 {strides = array<i32>} : memref<8x128xf32, #tpu.memory_space<vmem>>, vector<8x128xf32>,
    %c1_i32 = arith.constant 1 : i32
    %15 = arith.cmpi eq, %arg1, %c1_i32 : i32
    %16 = arith.extui %15 : i1 to i32
    %c0_i32_13 = arith.constant 0 : i32
    %17 = arith.cmpi ne, %16, %c0_i32_13 : i32
    scf.if %17 {
      %c0_14 = arith.constant 0 : index
      %c0_15 = arith.constant 0 : index
      %18 = vector.load %arg7[%c0_14, %c0_15] : memref<8x128xf32, #tpu.memory_space<vmem>>, vector<8x128xf32>
      %19 = arith.truncf %18 : vector<8x128xf32> to vector<8x128xbf16>
      %c0_16 = arith.constant 0 : index
      %c0_17 = arith.constant 0 : index
      %20 = vector.load %arg5[%c0_16, %c0_17] : memref<128x384xbf16, #tpu.memory_space<vmem>>, vector<128x384xbf16>
      %cst_18 = arith.constant dense<0.000000e+00> : vector<8x384xf32>
      %21 = tpu.matmul %19, %20, %cst_18 {dimension_numbers = #tpu.dot_dimension_numbers<[1], [0], [0], [1], [0, 0, 1, 1], [], []>} : vector<8x128xbf16>, vector<128x384xbf16>, vector<8x384xf32> -> vector<8x384xf32>
      %c0_19 = arith.constant 0 : index
      %c0_20 = arith.constant 0 : index
      %22 = vector.load %arg6[%c0_19, %c0_20] : memref<8x384xf32, #tpu.memory_space<vmem>>, vector<8x384xf32>
      tpu.vector_store %arg6[%c0_19, %c0_20], %21 {strides = array<i32>} : memref<8x384xf32, #tpu.memory_space<vmem>>, vector<8x384xf32>,
    } else {
    }
    return
  }
  func.func @transform_0(%arg0: i32, %arg1: i32) -> (i32, i32, i32) {
    %c0_i32 = arith.constant 0 : i32
    %c0_i32_0 = arith.constant 0 : i32
    return %arg0, %arg1, %c0_i32 : i32, i32, i32
  }
  func.func @transform_1(%arg0: i32, %arg1: i32) -> (i32, i32) {
    %c0_i32 = arith.constant 0 : i32
    %c0_i32_0 = arith.constant 0 : i32
    %c0_i32_1 = arith.constant 0 : i32
    return %c0_i32, %c0_i32_0 : i32, i32
  }
  func.func @transform_2(%arg0: i32, %arg1: i32) -> (i32, i32) {
    %c0_i32 = arith.constant 0 : i32
    %c0_i32_0 = arith.constant 0 : i32
    %c0_i32_1 = arith.constant 0 : i32
    return %c0_i32, %c0_i32_0 : i32, i32
  }
  func.func @transform_3(%arg0: i32, %arg1: i32) -> (i32, i32) {
    %c0_i32 = arith.constant 0 : i32
    %c0_i32_0 = arith.constant 0 : i32
    %c0_i32_1 = arith.constant 0 : i32
    return %c0_i32, %c0_i32_0 : i32, i32
  }
  func.func @transform_4(%arg0: i32, %arg1: i32) -> (i32, i32) {
    %c0_i32 = arith.constant 0 : i32
    %c0_i32_0 = arith.constant 0 : i32
    return %arg0, %c0_i32 : i32, i32
  }
}

</mosaic_0001>

<llo_original>
// kernel: _forward_impl.1
$region0: #{_forward_impl.1}
  #allocation0 [shape = 'u32[]', space=smem, size = 0x4, offset = 0x4, fixed_abs, tag = 'smem constant byte address 0x4 - core index']
  #allocation1 [shape = 'u32[144,128]{1,0:T(1,128)}', space=vmem, size = 0x12000, scoped, tag = 'internal scratch']
  #allocation2 [shape = 'f32[8,128]{1,0:T(8,128)}', space=vmem, size = 0x1000, scoped, tag = 'scratch operand']
  %s0 = inlined_call_operand.vmem [shape: bf16[8,256,36], index: 0, kind: input, shape index: {}]
  %s1 = inlined_call_operand.vmem [shape: bf16[8,1024], index: 1, kind: input, shape index: {}]
  %s2 = inlined_call_operand.vmem [shape: bf16[36,128], index: 2, kind: input, shape index: {}]
  %s3 = inlined_call_operand.vmem [shape: bf16[128,384], index: 3, kind: input, shape index: {}]
  %s4 = inlined_call_operand.vmem [shape: f32[8,384], index: 4, kind: output, shape index: {}]
  %s5 = sld [smem:[#allocation0]]
  $region98: #{_forward_impl.1} parent=0
    _
  %s7 = ssub.s32 1, %s5
  %s8 = scalar_select 0, %s7, %s5
  $region1: #{_forward_impl.1} parent=0
    #allocation3 [shape = 'u8[524288]{0}', space=vmem, size = 0x80000, scoped, tag = 'input window, operand 0']
    loop: start=0, step=1, limit=4
    $region2: #{_forward_impl.1} parent=1 // loop_pre_header
      _
    $region3: #{_forward_impl.1} parent=1 // loop_header
      %s10 = sphi 0, %s14
      %p11 = scmp.ge.s32.totalorder %s10, 4
      %s17 = sphi 0, %s29
      %s18 = sphi 0, %s25
      %s19 = sphi 0, %s17
      %s20 = sphi 0, %s18
      %s21 = sphi 0, %s19
      %s22 = sphi 0, %s20
      %s34 = sphi 0, %s36
      %s37 = sphi 0, %s34
      %s38 = sphi 0, %s37
      %s54 = sphi 0, %s38
      %s58 = sphi 0, %s58
      %s60 = sphi 0, %s58
      %s61 = sphi 0, %s60
      %s75 = sphi 0, %s61
      %s79 = sphi 0, %s79
      %s81 = sphi 0, %s79
      %s82 = sphi 0, %s81
      %s96 = sphi 0, %s82
      %s100 = sphi 0, %s100
      %s102 = sphi 0, %s100
      %s103 = sphi 0, %s102
      %s117 = sphi 0, %s103
      %s123 = sphi 0, %s125
      %s126 = sphi 0, %s123
      %s127 = sphi 0, %s126
      %s143 = sphi 0, %s127
    $region4: #{_forward_impl.1} parent=1 // loop_header_branch
      %13 = sbr.rel (%p11) target = $region8
    $region5: #{_forward_impl.1} parent=1 // loop_body
      %s15 = ssub.s32 %s10, 1
      %s16 = ssub.s32 %s10, 2
      %s23 = sadd.s32 1, %s18
      %p24 = scmp.ge.s32.totalorder %s23, 2
      %s25 = scalar_select %p24, 0, %s23
      %s26 = sadd.s32 1, %s17
      %s27 = scalar_select %p24, %s26, %s17
      %p28 = scmp.ge.s32.totalorder %s27, 1
      %s29 = scalar_select %p28, 0, %s27
      %s30 = ssub.s32 %s17, %s29
      %s31 = ssub.s32 %s18, %s25
      %s32 = sor.u32 %s30, %s31
      %p33 = scmp.eq.s32.totalorder %s32, 0
      %s35 = sadd.s32 %s34, 1
      %s36 = scalar_select %p33, %s34, %s35
      %p39 = pneg %p33
      %p40 = scmp.eq.s32.totalorder %s10, 1
      %p41 = por %p39, %p40
      %p42 = scmp.ne.s32.totalorder %s34, %s37
      %p43 = scmp.eq.s32.totalorder %s10, 0
      %p44 = por %p42, %p43
      %p45 = scmp.ne.s32.totalorder %s34, %s37
      %p46 = scmp.eq.s32.totalorder %s15, 1
      %p47 = por %p45, %p46
      %p48 = scmp.ne.s32.totalorder %s37, %s38
      %p49 = scmp.eq.s32.totalorder %s15, 0
      %p50 = por %p48, %p49
      %p51 = scmp.ne.s32.totalorder %s37, %s38
      %p52 = scmp.eq.s32.totalorder %s16, 1
      %p53 = por %p51, %p52
      %p55 = scmp.ne.s32.totalorder %s38, %s54
      %p56 = scmp.eq.s32.totalorder %s16, 0
      %p57 = por %p55, %p56
      %s59 = sadd.s32 %s58, 1
      %p62 = scmp.eq.s32.totalorder %s10, 1
      %p63 = scmp.ne.s32.totalorder %s58, %s60
      %p64 = scmp.eq.s32.totalorder %s10, 0
      %p65 = por %p63, %p64
      %p66 = scmp.ne.s32.totalorder %s58, %s60
      %p67 = scmp.eq.s32.totalorder %s15, 1
      %p68 = por %p66, %p67
      %p69 = scmp.ne.s32.totalorder %s60, %s61
      %p70 = scmp.eq.s32.totalorder %s15, 0
      %p71 = por %p69, %p70
      %p72 = scmp.ne.s32.totalorder %s60, %s61
      %p73 = scmp.eq.s32.totalorder %s16, 1
      %p74 = por %p72, %p73
      %p76 = scmp.ne.s32.totalorder %s61, %s75
      %p77 = scmp.eq.s32.totalorder %s16, 0
      %p78 = por %p76, %p77
      %s80 = sadd.s32 %s79, 1
      %p83 = scmp.eq.s32.totalorder %s10, 1
      %p84 = scmp.ne.s32.totalorder %s79, %s81
      %p85 = scmp.eq.s32.totalorder %s10, 0
      %p86 = por %p84, %p85
      %p87 = scmp.ne.s32.totalorder %s79, %s81
      %p88 = scmp.eq.s32.totalorder %s15, 1
      %p89 = por %p87, %p88
      %p90 = scmp.ne.s32.totalorder %s81, %s82
      %p91 = scmp.eq.s32.totalorder %s15, 0
      %p92 = por %p90, %p91
      %p93 = scmp.ne.s32.totalorder %s81, %s82
      %p94 = scmp.eq.s32.totalorder %s16, 1
      %p95 = por %p93, %p94
      %p97 = scmp.ne.s32.totalorder %s82, %s96
      %p98 = scmp.eq.s32.totalorder %s16, 0
      %p99 = por %p97, %p98
      %s101 = sadd.s32 %s100, 1
      %p104 = scmp.eq.s32.totalorder %s10, 1
      %p105 = scmp.ne.s32.totalorder %s100, %s102
      %p106 = scmp.eq.s32.totalorder %s10, 0
      %p107 = por %p105, %p106
      %p108 = scmp.ne.s32.totalorder %s100, %s102
      %p109 = scmp.eq.s32.totalorder %s15, 1
      %p110 = por %p108, %p109
      %p111 = scmp.ne.s32.totalorder %s102, %s103
      %p112 = scmp.eq.s32.totalorder %s15, 0
      %p113 = por %p111, %p112
      %p114 = scmp.ne.s32.totalorder %s102, %s103
      %p115 = scmp.eq.s32.totalorder %s16, 1
      %p116 = por %p114, %p115
      %p118 = scmp.ne.s32.totalorder %s103, %s117
      %p119 = scmp.eq.s32.totalorder %s16, 0
      %p120 = por %p118, %p119
      %s121 = ssub.s32 %s17, %s29
      %p122 = scmp.eq.s32.totalorder %s121, 0
      %s124 = sadd.s32 %s123, 1
      %s125 = scalar_select %p122, %s123, %s124
      %p128 = pneg %p122
      %p129 = scmp.eq.s32.totalorder %s10, 1
      %p130 = por %p128, %p129
      %p131 = scmp.ne.s32.totalorder %s123, %s126
      %p132 = scmp.eq.s32.totalorder %s10, 0
      %p133 = por %p131, %p132
      %p134 = scmp.ne.s32.totalorder %s123, %s126
      %p135 = scmp.eq.s32.totalorder %s15, 1
      %p136 = por %p134, %p135
      %p137 = scmp.ne.s32.totalorder %s126, %s127
      %p138 = scmp.eq.s32.totalorder %s15, 0
      %p139 = por %p137, %p138
      %p140 = scmp.ne.s32.totalorder %s126, %s127
      %p141 = scmp.eq.s32.totalorder %s16, 1
      %p142 = por %p140, %p141
      %p144 = scmp.ne.s32.totalorder %s127, %s143
      %p145 = scmp.eq.s32.totalorder %s16, 0
      %p146 = por %p144, %p145
      %p147 = scmp.le.s32.totalorder 1, %s10
      %p148 = scmp.lt.s32.totalorder %s10, 3
      %p149 = pnand %p147, %p148
      %p150 = pneg %p149
      // Predicated region
      $region9: #{_forward_impl.1} parent=5 // pred_check
        _
      $region10: #{_forward_impl.1} parent=5 // pred_check_branch
        %152 = sbr.rel (%p149) target = $region12
      $region11: #{_forward_impl.1} parent=5 // pred_region
        %s153 = ssub.s32 %s10, 1
        // Predicated region
        $region13: #{_forward_impl.1} parent=11 // pred_check
          %p154 = pneg %p71
        $region14: #{_forward_impl.1} parent=11 // pred_check_branch
          %156 = sbr.rel (%p154) target = $region16
        $region15: #{_forward_impl.1} parent=11 // pred_region
          _
        $region16: #{_forward_impl.1} parent=11 // pred_fallthru
          _
        // Predicated region
        $region17: #{_forward_impl.1} parent=11 // pred_check
          %p157 = pneg %p92
        $region18: #{_forward_impl.1} parent=11 // pred_check_branch
          %159 = sbr.rel (%p157) target = $region20
        $region19: #{_forward_impl.1} parent=11 // pred_region
          _
        $region20: #{_forward_impl.1} parent=11 // pred_fallthru
          _
        // Predicated region
        $region21: #{_forward_impl.1} parent=11 // pred_check
          %p160 = pneg %p113
        $region22: #{_forward_impl.1} parent=11 // pred_check_branch
          %162 = sbr.rel (%p160) target = $region24
        $region23: #{_forward_impl.1} parent=11 // pred_region
          _
        $region24: #{_forward_impl.1} parent=11 // pred_fallthru
          _
      $region12: #{_forward_impl.1} parent=5 // pred_fallthru
        _
      %p163 = scmp.lt.s32.totalorder %s10, 2
      // Predicated region
      $region25: #{_forward_impl.1} parent=5 // pred_check
        %p164 = pneg %p163
      $region26: #{_forward_impl.1} parent=5 // pred_check_branch
        %166 = sbr.rel (%p164) target = $region28
      $region27: #{_forward_impl.1} parent=5 // pred_region
        // Predicated region
        $region29: #{_forward_impl.1} parent=27 // pred_check
          %p167 = pneg %p44
        $region30: #{_forward_impl.1} parent=27 // pred_check_branch
          %169 = sbr.rel (%p167) target = $region32
        $region31: #{_forward_impl.1} parent=27 // pred_region
          %s170 = sand.u32 %s34, 1
          %s171 = sand.u32 %s34, 1
          %s172 = smul.addr %s171, 512
          %s173 = scalar_lea.vmem [#allocation3], %s172
          %s174 = smul.u32 8, %s17
          %s175 = smul.u32 16, %s18
          %s176 = smul.addr %s174, 32
          %s177 = sadd.s32 %s175, %s176
          %s178 = smul.addr %s177, 4
          %s179 = scalar_lea.vmem %s0, %s178
          // Predicated region
          $region33: #{_forward_impl.1} parent=31 // pred_check
            _
          $region34: #{_forward_impl.1} parent=31 // pred_check_branch
            %181 = sbr.rel (0) target = $region36
          $region35: #{_forward_impl.1} parent=31 // pred_region
            // Predicated region
            $region37: #{_forward_impl.1} parent=35 // pred_check
              _
            $region38: #{_forward_impl.1} parent=35 // pred_check_branch
              %183 = sbr.rel target = $region40
            $region39: #{_forward_impl.1} parent=35 // pred_region
              // Predicated region
              $region52: #{_forward_impl.1} parent=39 // pred_check
                _
              $region53: #{_forward_impl.1} parent=39 // pred_check_branch
                %453 = sbr.rel (0) target = $region55
              $region54: #{_forward_impl.1} parent=39 // pred_region
                loop: start=0, step=1, limit=1
                $region56: #{_forward_impl.1} parent=54 // loop_pre_header
                  _
                $region57: #{_forward_impl.1} parent=54 // loop_header
                  %s455 = sphi 0, %s459
                  %p456 = scmp.ge.s32.totalorder %s455, 1
                  %s460 = sphi %s179, %s179
                  %s461 = sphi %s173, %s173
                $region58: #{_forward_impl.1} parent=54 // loop_header_branch
                  %458 = sbr.rel (%p456) target = $region62
                $region59: #{_forward_impl.1} parent=54 // loop_body
                  _
                $region60: #{_forward_impl.1} parent=54 // loop_footer
                  %s459 = sadd.s32 1, %s455
                $region61: #{_forward_impl.1} parent=54 // loop_footer_branch
                  %454 = sbr.rel target = $region57
                $region62: #{_forward_impl.1} parent=54 // loop_exit
                  _
                %s463 = ssub.s32 16, 1
                loop: start=0, step=1, limit=1
                $region63: #{_forward_impl.1} parent=54 // loop_pre_header
                  _
                $region64: #{_forward_impl.1} parent=54 // loop_header
                  %s465 = sphi 0, %s469
                  %p466 = scmp.ge.s32.totalorder %s465, 1
                  %s470 = sphi %s179, %s179
                  %s471 = sphi %s173, %s173
                $region65: #{_forward_impl.1} parent=54 // loop_header_branch
                  %468 = sbr.rel (%p466) target = $region69
                $region66: #{_forward_impl.1} parent=54 // loop_body
                  %v472 = vld [vmem:[%s470] sm:%s463]
                  %473 = vst [vmem:[%s471] sm:%s463] %v472
                  %v474 = vld [vmem:[%s470 + $0x4] sm:%s463]
                  %475 = vst [vmem:[%s471 + $0x4] sm:%s463] %v474
                  %v476 = vld [vmem:[%s470 + $0x8] sm:%s463]
                  %477 = vst [vmem:[%s471 + $0x8] sm:%s463] %v476
                  %v478 = vld [vmem:[%s470 + $0xc] sm:%s463]
                  %479 = vst [vmem:[%s471 + $0xc] sm:%s463] %v478
                  %v480 = vld [vmem:[%s470 + $0x10] sm:%s463]
                  %481 = vst [vmem:[%s471 + $0x10] sm:%s463] %v480
                  %v482 = vld [vmem:[%s470 + $0x14] sm:%s463]
                  %483 = vst [vmem:[%s471 + $0x14] sm:%s463] %v482
                  %v484 = vld [vmem:[%s470 + $0x18] sm:%s463]
                  %485 = vst [vmem:[%s471 + $0x18] sm:%s463] %v484
                  %v486 = vld [vmem:[%s470 + $0x1c] sm:%s463]
                  %487 = vst [vmem:[%s471 + $0x1c] sm:%s463] %v486
                  %v488 = vld [vmem:[%s470 + $0x20] sm:%s463]
                  %489 = vst [vmem:[%s471 + $0x20] sm:%s463] %v488
                  %v490 = vld [vmem:[%s470 + $0x24] sm:%s463]
                  %491 = vst [vmem:[%s471 + $0x24] sm:%s463] %v490
                  %v492 = vld [vmem:[%s470 + $0x28] sm:%s463]
                  %493 = vst [vmem:[%s471 + $0x28] sm:%s463] %v492
                  %v494 = vld [vmem:[%s470 + $0x2c] sm:%s463]
                  %495 = vst [vmem:[%s471 + $0x2c] sm:%s463] %v494
                  %v496 = vld [vmem:[%s470 + $0x30] sm:%s463]
                  %497 = vst [vmem:[%s471 + $0x30] sm:%s463] %v496
                  %v498 = vld [vmem:[%s470 + $0x34] sm:%s463]
                  %499 = vst [vmem:[%s471 + $0x34] sm:%s463] %v498
                  %v500 = vld [vmem:[%s470 + $0x38] sm:%s463]
                  %501 = vst [vmem:[%s471 + $0x38] sm:%s463] %v500
                  %v502 = vld [vmem:[%s470 + $0x3c] sm:%s463]
                  %503 = vst [vmem:[%s471 + $0x3c] sm:%s463] %v502
                  %v504 = vld [vmem:[%s470 + $0x80] sm:%s463]
                  %505 = vst [vmem:[%s471 + $0x40] sm:%s463] %v504
                  %v506 = vld [vmem:[%s470 + $0x84] sm:%s463]
                  %507 = vst [vmem:[%s471 + $0x44] sm:%s463] %v506
                  %v508 = vld [vmem:[%s470 + $0x88] sm:%s463]
                  %509 = vst [vmem:[%s471 + $0x48] sm:%s463] %v508
                  %v510 = vld [vmem:[%s470 + $0x8c] sm:%s463]
                  %511 = vst [vmem:[%s471 + $0x4c] sm:%s463] %v510
                  %v512 = vld [vmem:[%s470 + $0x90] sm:%s463]
                  %513 = vst [vmem:[%s471 + $0x50] sm:%s463] %v512
                  %v514 = vld [vmem:[%s470 + $0x94] sm:%s463]
                  %515 = vst [vmem:[%s471 + $0x54] sm:%s463] %v514
                  %v516 = vld [vmem:[%s470 + $0x98] sm:%s463]
                  %517 = vst [vmem:[%s471 + $0x58] sm:%s463] %v516
                  %v518 = vld [vmem:[%s470 + $0x9c] sm:%s463]
                  %519 = vst [vmem:[%s471 + $0x5c] sm:%s463] %v518
                  %v520 = vld [vmem:[%s470 + $0xa0] sm:%s463]
                  %521 = vst [vmem:[%s471 + $0x60] sm:%s463] %v520
                  %v522 = vld [vmem:[%s470 + $0xa4] sm:%s463]
                  %523 = vst [vmem:[%s471 + $0x64] sm:%s463] %v522
                  %v524 = vld [vmem:[%s470 + $0xa8] sm:%s463]
                  %525 = vst [vmem:[%s471 + $0x68] sm:%s463] %v524
                  %v526 = vld [vmem:[%s470 + $0xac] sm:%s463]
                  %527 = vst [vmem:[%s471 + $0x6c] sm:%s463] %v526
                  %v528 = vld [vmem:[%s470 + $0xb0] sm:%s463]
                  %529 = vst [vmem:[%s471 + $0x70] sm:%s463] %v528
                  %v530 = vld [vmem:[%s470 + $0xb4] sm:%s463]
                  %531 = vst [vmem:[%s471 + $0x74] sm:%s463] %v530
                  %v532 = vld [vmem:[%s470 + $0xb8] sm:%s463]
                  %533 = vst [vmem:[%s471 + $0x78] sm:%s463] %v532
                  %v534 = vld [vmem:[%s470 + $0xbc] sm:%s463]
                  %535 = vst [vmem:[%s471 + $0x7c] sm:%s463] %v534
                  %v536 = vld [vmem:[%s470 + $0x100] sm:%s463]
                  %537 = vst [vmem:[%s471 + $0x80] sm:%s463] %v536
                  %v538 = vld [vmem:[%s470 + $0x104] sm:%s463]
                  %539 = vst [vmem:[%s471 + $0x84] sm:%s463] %v538
                  %v540 = vld [vmem:[%s470 + $0x108] sm:%s463]
                  %541 = vst [vmem:[%s471 + $0x88] sm:%s463] %v540
                  %v542 = vld [vmem:[%s470 + $0x10c] sm:%s463]
                  %543 = vst [vmem:[%s471 + $0x8c] sm:%s463] %v542
                  %v544 = vld [vmem:[%s470 + $0x110] sm:%s463]
                  %545 = vst [vmem:[%s471 + $0x90] sm:%s463] %v544
                  %v546 = vld [vmem:[%s470 + $0x114] sm:%s463]
                  %547 = vst [vmem:[%s471 + $0x94] sm:%s463] %v546
                  %v548 = vld [vmem:[%s470 + $0x118] sm:%s463]
                  %549 = vst [vmem:[%s471 + $0x98] sm:%s463] %v548
                  %v550 = vld [vmem:[%s470 + $0x11c] sm:%s463]
                  %551 = vst [vmem:[%s471 + $0x9c] sm:%s463] %v550
                  %v552 = vld [vmem:[%s470 + $0x120] sm:%s463]
                  %553 = vst [vmem:[%s471 + $0xa0] sm:%s463] %v552
                  %v554 = vld [vmem:[%s470 + $0x124] sm:%s463]
                  %555 = vst [vmem:[%s471 + $0xa4] sm:%s463] %v554
                  %v556 = vld [vmem:[%s470 + $0x128] sm:%s463]
                  %557 = vst [vmem:[%s471 + $0xa8] sm:%s463] %v556
                  %v558 = vld [vmem:[%s470 + $0x12c] sm:%s463]
                  %559 = vst [vmem:[%s471 + $0xac] sm:%s463] %v558
                  %v560 = vld [vmem:[%s470 + $0x130] sm:%s463]
                  %561 = vst [vmem:[%s471 + $0xb0] sm:%s463] %v560
                  %v562 = vld [vmem:[%s470 + $0x134] sm:%s463]
                  %563 = vst [vmem:[%s471 + $0xb4] sm:%s463] %v562
                  %v564 = vld [vmem:[%s470 + $0x138] sm:%s463]
                  %565 = vst [vmem:[%s471 + $0xb8] sm:%s463] %v564
                  %v566 = vld [vmem:[%s470 + $0x13c] sm:%s463]
                  %567 = vst [vmem:[%s471 + $0xbc] sm:%s463] %v566
                  %v568 = vld [vmem:[%s470 + $0x180] sm:%s463]
                  %569 = vst [vmem:[%s471 + $0xc0] sm:%s463] %v568
                  %v570 = vld [vmem:[%s470 + $0x184] sm:%s463]
                  %571 = vst [vmem:[%s471 + $0xc4] sm:%s463] %v570
                  %v572 = vld [vmem:[%s470 + $0x188] sm:%s463]
                  %573 = vst [vmem:[%s471 + $0xc8] sm:%s463] %v572
                  %v574 = vld [vmem:[%s470 + $0x18c] sm:%s463]
                  %575 = vst [vmem:[%s471 + $0xcc] sm:%s463] %v574
                  %v576 = vld [vmem:[%s470 + $0x190] sm:%s463]
                  %577 = vst [vmem:[%s471 + $0xd0] sm:%s463] %v576
                  %v578 = vld [vmem:[%s470 + $0x194] sm:%s463]
                  %579 = vst [vmem:[%s471 + $0xd4] sm:%s463] %v578
                  %v580 = vld [vmem:[%s470 + $0x198] sm:%s463]
                  %581 = vst [vmem:[%s471 + $0xd8] sm:%s463] %v580
                  %v582 = vld [vmem:[%s470 + $0x19c] sm:%s463]
                  %583 = vst [vmem:[%s471 + $0xdc] sm:%s463] %v582
                  %v584 = vld [vmem:[%s470 + $0x1a0] sm:%s463]
                  %585 = vst [vmem:[%s471 + $0xe0] sm:%s463] %v584
                  %v586 = vld [vmem:[%s470 + $0x1a4] sm:%s463]
                  %587 = vst [vmem:[%s471 + $0xe4] sm:%s463] %v586
                  %v588 = vld [vmem:[%s470 + $0x1a8] sm:%s463]
                  %589 = vst [vmem:[%s471 + $0xe8] sm:%s463] %v588
                  %v590 = vld [vmem:[%s470 + $0x1ac] sm:%s463]
                  %591 = vst [vmem:[%s471 + $0xec] sm:%s463] %v590
                  %v592 = vld [vmem:[%s470 + $0x1b0] sm:%s463]
                  %593 = vst [vmem:[%s471 + $0xf0] sm:%s463] %v592
                  %v594 = vld [vmem:[%s470 + $0x1b4] sm:%s463]
                  %595 = vst [vmem:[%s471 + $0xf4] sm:%s463] %v594
                  %v596 = vld [vmem:[%s470 + $0x1b8] sm:%s463]
                  %597 = vst [vmem:[%s471 + $0xf8] sm:%s463] %v596
                  %v598 = vld [vmem:[%s470 + $0x1bc] sm:%s463]
                  %599 = vst [vmem:[%s471 + $0xfc] sm:%s463] %v598
                  %v600 = vld [vmem:[%s470 + $0x200] sm:%s463]
                  %601 = vst [vmem:[%s471 + $0x100] sm:%s463] %v600
                  %v602 = vld [vmem:[%s470 + $0x204] sm:%s463]
                  %603 = vst [vmem:[%s471 + $0x104] sm:%s463] %v602
                  %v604 = vld [vmem:[%s470 + $0x208] sm:%s463]
                  %605 = vst [vmem:[%s471 + $0x108] sm:%s463] %v604
                  %v606 = vld [vmem:[%s470 + $0x20c] sm:%s463]
                  %607 = vst [vmem:[%s471 + $0x10c] sm:%s463] %v606
                  %v608 = vld [vmem:[%s470 + $0x210] sm:%s463]
                  %609 = vst [vmem:[%s471 + $0x110] sm:%s463] %v608
                  %v610 = vld [vmem:[%s470 + $0x214] sm:%s463]
                  %611 = vst [vmem:[%s471 + $0x114] sm:%s463] %v610
                  %v612 = vld [vmem:[%s470 + $0x218] sm:%s463]
                  %613 = vst [vmem:[%s471 + $0x118] sm:%s463] %v612
                  %v614 = vld [vmem:[%s470 + $0x21c] sm:%s463]
                  %615 = vst [vmem:[%s471 + $0x11c] sm:%s463] %v614
                  %v616 = vld [vmem:[%s470 + $0x220] sm:%s463]
                  %617 = vst [vmem:[%s471 + $0x120] sm:%s463] %v616
                  %v618 = vld [vmem:[%s470 + $0x224] sm:%s463]
                  %619 = vst [vmem:[%s471 + $0x124] sm:%s463] %v618
                  %v620 = vld [vmem:[%s470 + $0x228] sm:%s463]
                  %621 = vst [vmem:[%s471 + $0x128] sm:%s463] %v620
                  %v622 = vld [vmem:[%s470 + $0x22c] sm:%s463]
                  %623 = vst [vmem:[%s471 + $0x12c] sm:%s463] %v622
                  %v624 = vld [vmem:[%s470 + $0x230] sm:%s463]
                  %625 = vst [vmem:[%s471 + $0x130] sm:%s463] %v624
                  %v626 = vld [vmem:[%s470 + $0x234] sm:%s463]
                  %627 = vst [vmem:[%s471 + $0x134] sm:%s463] %v626
                  %v628 = vld [vmem:[%s470 + $0x238] sm:%s463]
                  %629 = vst [vmem:[%s471 + $0x138] sm:%s463] %v628
                  %v630 = vld [vmem:[%s470 + $0x23c] sm:%s463]
                  %631 = vst [vmem:[%s471 + $0x13c] sm:%s463] %v630
                  %v632 = vld [vmem:[%s470 + $0x280] sm:%s463]
                  %633 = vst [vmem:[%s471 + $0x140] sm:%s463] %v632
                  %v634 = vld [vmem:[%s470 + $0x284] sm:%s463]
                  %635 = vst [vmem:[%s471 + $0x144] sm:%s463] %v634
                  %v636 = vld [vmem:[%s470 + $0x288] sm:%s463]
                  %637 = vst [vmem:[%s471 + $0x148] sm:%s463] %v636
                  %v638 = vld [vmem:[%s470 + $0x28c] sm:%s463]
                  %639 = vst [vmem:[%s471 + $0x14c] sm:%s463] %v638
                  %v640 = vld [vmem:[%s470 + $0x290] sm:%s463]
                  %641 = vst [vmem:[%s471 + $0x150] sm:%s463] %v640
                  %v642 = vld [vmem:[%s470 + $0x294] sm:%s463]
                  %643 = vst [vmem:[%s471 + $0x154] sm:%s463] %v642
                  %v644 = vld [vmem:[%s470 + $0x298] sm:%s463]
                  %645 = vst [vmem:[%s471 + $0x158] sm:%s463] %v644
                  %v646 = vld [vmem:[%s470 + $0x29c] sm:%s463]
                  %647 = vst [vmem:[%s471 + $0x15c] sm:%s463] %v646
                  %v648 = vld [vmem:[%s470 + $0x2a0] sm:%s463]
                  %649 = vst [vmem:[%s471 + $0x160] sm:%s463] %v648
                  %v650 = vld [vmem:[%s470 + $0x2a4] sm:%s463]
                  %651 = vst [vmem:[%s471 + $0x164] sm:%s463] %v650
                  %v652 = vld [vmem:[%s470 + $0x2a8] sm:%s463]
                  %653 = vst [vmem:[%s471 + $0x168] sm:%s463] %v652
                  %v654 = vld [vmem:[%s470 + $0x2ac] sm:%s463]
                  %655 = vst [vmem:[%s471 + $0x16c] sm:%s463] %v654
                  %v656 = vld [vmem:[%s470 + $0x2b0] sm:%s463]
                  %657 = vst [vmem:[%s471 + $0x170] sm:%s463] %v656
                  %v658 = vld [vmem:[%s470 + $0x2b4] sm:%s463]
                  %659 = vst [vmem:[%s471 + $0x174] sm:%s463] %v658
                  %v660 = vld [vmem:[%s470 + $0x2b8] sm:%s463]
                  %661 = vst [vmem:[%s471 + $0x178] sm:%s463] %v660
                  %v662 = vld [vmem:[%s470 + $0x2bc] sm:%s463]
                  %663 = vst [vmem:[%s471 + $0x17c] sm:%s463] %v662
                  %v664 = vld [vmem:[%s470 + $0x300] sm:%s463]
                  %665 = vst [vmem:[%s471 + $0x180] sm:%s463] %v664
                  %v666 = vld [vmem:[%s470 + $0x304] sm:%s463]
                  %667 = vst [vmem:[%s471 + $0x184] sm:%s463] %v666
                  %v668 = vld [vmem:[%s470 + $0x308] sm:%s463]
                  %669 = vst [vmem:[%s471 + $0x188] sm:%s463] %v668
                  %v670 = vld [vmem:[%s470 + $0x30c] sm:%s463]
                  %671 = vst [vmem:[%s471 + $0x18c] sm:%s463] %v670
                  %v672 = vld [vmem:[%s470 + $0x310] sm:%s463]
                  %673 = vst [vmem:[%s471 + $0x190] sm:%s463] %v672
                  %v674 = vld [vmem:[%s470 + $0x314] sm:%s463]
                  %675 = vst [vmem:[%s471 + $0x194] sm:%s463] %v674
                  %v676 = vld [vmem:[%s470 + $0x318] sm:%s463]
                  %677 = vst [vmem:[%s471 + $0x198] sm:%s463] %v676
                  %v678 = vld [vmem:[%s470 + $0x31c] sm:%s463]
                  %679 = vst [vmem:[%s471 + $0x19c] sm:%s463] %v678
                  %v680 = vld [vmem:[%s470 + $0x320] sm:%s463]
                  %681 = vst [vmem:[%s471 + $0x1a0] sm:%s463] %v680
                  %v682 = vld [vmem:[%s470 + $0x324] sm:%s463]
                  %683 = vst [vmem:[%s471 + $0x1a4] sm:%s463] %v682
                  %v684 = vld [vmem:[%s470 + $0x328] sm:%s463]
                  %685 = vst [vmem:[%s471 + $0x1a8] sm:%s463] %v684
                  %v686 = vld [vmem:[%s470 + $0x32c] sm:%s463]
                  %687 = vst [vmem:[%s471 + $0x1ac] sm:%s463] %v686
                  %v688 = vld [vmem:[%s470 + $0x330] sm:%s463]
                  %689 = vst [vmem:[%s471 + $0x1b0] sm:%s463] %v688
                  %v690 = vld [vmem:[%s470 + $0x334] sm:%s463]
                  %691 = vst [vmem:[%s471 + $0x1b4] sm:%s463] %v690
                  %v692 = vld [vmem:[%s470 + $0x338] sm:%s463]
                  %693 = vst [vmem:[%s471 + $0x1b8] sm:%s463] %v692
                  %v694 = vld [vmem:[%s470 + $0x33c] sm:%s463]
                  %695 = vst [vmem:[%s471 + $0x1bc] sm:%s463] %v694
                  %v696 = vld [vmem:[%s470 + $0x380] sm:%s463]
                  %697 = vst [vmem:[%s471 + $0x1c0] sm:%s463] %v696
                  %v698 = vld [vmem:[%s470 + $0x384] sm:%s463]
                  %699 = vst [vmem:[%s471 + $0x1c4] sm:%s463] %v698
                  %v700 = vld [vmem:[%s470 + $0x388] sm:%s463]
                  %701 = vst [vmem:[%s471 + $0x1c8] sm:%s463] %v700
                  %v702 = vld [vmem:[%s470 + $0x38c] sm:%s463]
                  %703 = vst [vmem:[%s471 + $0x1cc] sm:%s463] %v702
                  %v704 = vld [vmem:[%s470 + $0x390] sm:%s463]
                  %705 = vst [vmem:[%s471 + $0x1d0] sm:%s463] %v704
                  %v706 = vld [vmem:[%s470 + $0x394] sm:%s463]
                  %707 = vst [vmem:[%s471 + $0x1d4] sm:%s463] %v706
                  %v708 = vld [vmem:[%s470 + $0x398] sm:%s463]
                  %709 = vst [vmem:[%s471 + $0x1d8] sm:%s463] %v708
                  %v710 = vld [vmem:[%s470 + $0x39c] sm:%s463]
                  %711 = vst [vmem:[%s471 + $0x1dc] sm:%s463] %v710
                  %v712 = vld [vmem:[%s470 + $0x3a0] sm:%s463]
                  %713 = vst [vmem:[%s471 + $0x1e0] sm:%s463] %v712
                  %v714 = vld [vmem:[%s470 + $0x3a4] sm:%s463]
                  %715 = vst [vmem:[%s471 + $0x1e4] sm:%s463] %v714
                  %v716 = vld [vmem:[%s470 + $0x3a8] sm:%s463]
                  %717 = vst [vmem:[%s471 + $0x1e8] sm:%s463] %v716
                  %v718 = vld [vmem:[%s470 + $0x3ac] sm:%s463]
                  %719 = vst [vmem:[%s471 + $0x1ec] sm:%s463] %v718
                  %v720 = vld [vmem:[%s470 + $0x3b0] sm:%s463]
                  %721 = vst [vmem:[%s471 + $0x1f0] sm:%s463] %v720
                  %v722 = vld [vmem:[%s470 + $0x3b4] sm:%s463]
                  %723 = vst [vmem:[%s471 + $0x1f4] sm:%s463] %v722
                  %v724 = vld [vmem:[%s470 + $0x3b8] sm:%s463]
                  %725 = vst [vmem:[%s471 + $0x1f8] sm:%s463] %v724
                  %v726 = vld [vmem:[%s470 + $0x3bc] sm:%s463]
                  %727 = vst [vmem:[%s471 + $0x1fc] sm:%s463] %v726
                $region67: #{_forward_impl.1} parent=54 // loop_footer
                  %s469 = sadd.s32 1, %s465
                $region68: #{_forward_impl.1} parent=54 // loop_footer_branch
                  %464 = sbr.rel target = $region64
                $region69: #{_forward_impl.1} parent=54 // loop_exit
                  _
              $region55: #{_forward_impl.1} parent=39 // pred_fallthru
                _
            $region40: #{_forward_impl.1} parent=35 // pred_fallthru
              _
            // Predicated region
            $region41: #{_forward_impl.1} parent=35 // pred_check
              _
            $region42: #{_forward_impl.1} parent=35 // pred_check_branch
              %185 = sbr.rel (0) target = $region44
            $region43: #{_forward_impl.1} parent=35 // pred_region
              %s187 = ssub.s32 16, 1
              loop: start=0, step=1, limit=1
              $region45: #{_forward_impl.1} parent=43 // loop_pre_header
                _
              $region46: #{_forward_impl.1} parent=43 // loop_header
                %s189 = sphi 0, %s193
                %p190 = scmp.ge.s32.totalorder %s189, 1
                %s194 = sphi %s179, %s179
                %s195 = sphi %s173, %s173
              $region47: #{_forward_impl.1} parent=43 // loop_header_branch
                %192 = sbr.rel (%p190) target = $region51
              $region48: #{_forward_impl.1} parent=43 // loop_body
                %v196 = vld [vmem:[%s194] sm:%s187]
                %197 = vst [vmem:[%s195] sm:%s187] %v196
                %v198 = vld [vmem:[%s194 + $0x4] sm:%s187]
                %199 = vst [vmem:[%s195 + $0x4] sm:%s187] %v198
                %v200 = vld [vmem:[%s194 + $0x8] sm:%s187]
                %201 = vst [vmem:[%s195 + $0x8] sm:%s187] %v200
                %v202 = vld [vmem:[%s194 + $0xc] sm:%s187]
                %203 = vst [vmem:[%s195 + $0xc] sm:%s187] %v202
                %v204 = vld [vmem:[%s194 + $0x10] sm:%s187]
                %205 = vst [vmem:[%s195 + $0x10] sm:%s187] %v204
                %v206 = vld [vmem:[%s194 + $0x14] sm:%s187]
                %207 = vst [vmem:[%s195 + $0x14] sm:%s187] %v206
                %v208 = vld [vmem:[%s194 + $0x18] sm:%s187]
                %209 = vst [vmem:[%s195 + $0x18] sm:%s187] %v208
                %v210 = vld [vmem:[%s194 + $0x1c] sm:%s187]
                %211 = vst [vmem:[%s195 + $0x1c] sm:%s187] %v210
                %v212 = vld [vmem:[%s194 + $0x20] sm:%s187]
                %213 = vst [vmem:[%s195 + $0x20] sm:%s187] %v212
                %v214 = vld [vmem:[%s194 + $0x24] sm:%s187]
                %215 = vst [vmem:[%s195 + $0x24] sm:%s187] %v214
                %v216 = vld [vmem:[%s194 + $0x28] sm:%s187]
                %217 = vst [vmem:[%s195 + $0x28] sm:%s187] %v216
                %v218 = vld [vmem:[%s194 + $0x2c] sm:%s187]
                %219 = vst [vmem:[%s195 + $0x2c] sm:%s187] %v218
                %v220 = vld [vmem:[%s194 + $0x30] sm:%s187]
                %221 = vst [vmem:[%s195 + $0x30] sm:%s187] %v220
                %v222 = vld [vmem:[%s194 + $0x34] sm:%s187]
                %223 = vst [vmem:[%s195 + $0x34] sm:%s187] %v222
                %v224 = vld [vmem:[%s194 + $0x38] sm:%s187]
                %225 = vst [vmem:[%s195 + $0x38] sm:%s187] %v224
                %v226 = vld [vmem:[%s194 + $0x3c] sm:%s187]
                %227 = vst [vmem:[%s195 + $0x3c] sm:%s187] %v226
                %v228 = vld [vmem:[%s194 + $0x80] sm:%s187]
                %229 = vst [vmem:[%s195 + $0x40] sm:%s187] %v228
                %v230 = vld [vmem:[%s194 + $0x84] sm:%s187]
                %231 = vst [vmem:[%s195 + $0x44] sm:%s187] %v230
                %v232 = vld [vmem:[%s194 + $0x88] sm:%s187]
                %233 = vst [vmem:[%s195 + $0x48] sm:%s187] %v232
                %v234 = vld [vmem:[%s194 + $0x8c] sm:%s187]
                %235 = vst [vmem:[%s195 + $0x4c] sm:%s187] %v234
                %v236 = vld [vmem:[%s194 + $0x90] sm:%s187]
                %237 = vst [vmem:[%s195 + $0x50] sm:%s187] %v236
                %v238 = vld [vmem:[%s194 + $0x94] sm:%s187]
                %239 = vst [vmem:[%s195 + $0x54] sm:%s187] %v238
                %v240 = vld [vmem:[%s194 + $0x98] sm:%s187]
                %241 = vst [vmem:[%s195 + $0x58] sm:%s187] %v240
                %v242 = vld [vmem:[%s194 + $0x9c] sm:%s187]
                %243 = vst [vmem:[%s195 + $0x5c] sm:%s187] %v242
                %v244 = vld [vmem:[%s194 + $0xa0] sm:%s187]
                %245 = vst [vmem:[%s195 + $0x60] sm:%s187] %v244
                %v246 = vld [vmem:[%s194 + $0xa4] sm:%s187]
                %247 = vst [vmem:[%s195 + $0x64] sm:%s187] %v246
                %v248 = vld [vmem:[%s194 + $0xa8] sm:%s187]
                %249 = vst [vmem:[%s195 + $0x68] sm:%s187] %v248
                %v250 = vld [vmem:[%s194 + $0xac] sm:%s187]
                %251 = vst [vmem:[%s195 + $0x6c] sm:%s187] %v250
                %v252 = vld [vmem:[%s194 + $0xb0] sm:%s187]
                %253 = vst [vmem:[%s195 + $0x70] sm:%s187] %v252
                %v254 = vld [vmem:[%s194 + $0xb4] sm:%s187]
                %255 = vst [vmem:[%s195 + $0x74] sm:%s187] %v254
                %v256 = vld [vmem:[%s194 + $0xb8] sm:%s187]
                %257 = vst [vmem:[%s195 + $0x78] sm:%s187] %v256
                %v258 = vld [vmem:[%s194 + $0xbc] sm:%s187]
                %259 = vst [vmem:[%s195 + $0x7c] sm:%s187] %v258
                %v260 = vld [vmem:[%s194 + $0x100] sm:%s187]
                %261 = vst [vmem:[%s195 + $0x80] sm:%s187] %v260
                %v262 = vld [vmem:[%s194 + $0x104] sm:%s187]
                %263 = vst [vmem:[%s195 + $0x84] sm:%s187] %v262
                %v264 = vld [vmem:[%s194 + $0x108] sm:%s187]
                %265 = vst [vmem:[%s195 + $0x88] sm:%s187] %v264
                %v266 = vld [vmem:[%s194 + $0x10c] sm:%s187]
                %267 = vst [vmem:[%s195 + $0x8c] sm:%s187] %v266
                %v268 = vld [vmem:[%s194 + $0x110] sm:%s187]
                %269 = vst [vmem:[%s195 + $0x90] sm:%s187] %v268
                %v270 = vld [vmem:[%s194 + $0x114] sm:%s187]
                %271 = vst [vmem:[%s195 + $0x94] sm:%s187] %v270
                %v272 = vld [vmem:[%s194 + $0x118] sm:%s187]
                %273 = vst [vmem:[%s195 + $0x98] sm:%s187] %v272
                %v274 = vld [vmem:[%s194 + $0x11c] sm:%s187]
                %275 = vst [vmem:[%s195 + $0x9c] sm:%s187] %v274
                %v276 = vld [vmem:[%s194 + $0x120] sm:%s187]
                %277 = vst [vmem:[%s195 + $0xa0] sm:%s187] %v276
                %v278 = vld [vmem:[%s194 + $0x124] sm:%s187]
                %279 = vst [vmem:[%s195 + $0xa4] sm:%s187] %v278
                %v280 = vld [vmem:[%s194 + $0x128] sm:%s187]
                %281 = vst [vmem:[%s195 + $0xa8] sm:%s187] %v280
                %v282 = vld [vmem:[%s194 + $0x12c] sm:%s187]
                %283 = vst [vmem:[%s195 + $0xac] sm:%s187] %v282
                %v284 = vld [vmem:[%s194 + $0x130] sm:%s187]
                %285 = vst [vmem:[%s195 + $0xb0] sm:%s187] %v284
                %v286 = vld [vmem:[%s194 + $0x134] sm:%s187]
                %287 = vst [vmem:[%s195 + $0xb4] sm:%s187] %v286
                %v288 = vld [vmem:[%s194 + $0x138] sm:%s187]
                %289 = vst [vmem:[%s195 + $0xb8] sm:%s187] %v288
                %v290 = vld [vmem:[%s194 + $0x13c] sm:%s187]
                %291 = vst [vmem:[%s195 + $0xbc] sm:%s187] %v290
                %v292 = vld [vmem:[%s194 + $0x180] sm:%s187]
                %293 = vst [vmem:[%s195 + $0xc0] sm:%s187] %v292
                %v294 = vld [vmem:[%s194 + $0x184] sm:%s187]
                %295 = vst [vmem:[%s195 + $0xc4] sm:%s187] %v294
                %v296 = vld [vmem:[%s194 + $0x188] sm:%s187]
                %297 = vst [vmem:[%s195 + $0xc8] sm:%s187] %v296
                %v298 = vld [vmem:[%s194 + $0x18c] sm:%s187]
                %299 = vst [vmem:[%s195 + $0xcc] sm:%s187] %v298
                %v300 = vld [vmem:[%s194 + $0x190] sm:%s187]
                %301 = vst [vmem:[%s195 + $0xd0] sm:%s187] %v300
                %v302 = vld [vmem:[%s194 + $0x194] sm:%s187]
                %303 = vst [vmem:[%s195 + $0xd4] sm:%s187] %v302
                %v304 = vld [vmem:[%s194 + $0x198] sm:%s187]
                %305 = vst [vmem:[%s195 + $0xd8] sm:%s187] %v304
                %v306 = vld [vmem:[%s194 + $0x19c] sm:%s187]
                %307 = vst [vmem:[%s195 + $0xdc] sm:%s187] %v306
                %v308 = vld [vmem:[%s194 + $0x1a0] sm:%s187]
                %309 = vst [vmem:[%s195 + $0xe0] sm:%s187] %v308
                %v310 = vld [vmem:[%s194 + $0x1a4] sm:%s187]
                %311 = vst [vmem:[%s195 + $0xe4] sm:%s187] %v310
                %v312 = vld [vmem:[%s194 + $0x1a8] sm:%s187]
                %313 = vst [vmem:[%s195 + $0xe8] sm:%s187] %v312
                %v314 = vld [vmem:[%s194 + $0x1ac] sm:%s187]
                %315 = vst [vmem:[%s195 + $0xec] sm:%s187] %v314
                %v316 = vld [vmem:[%s194 + $0x1b0] sm:%s187]
                %317 = vst [vmem:[%s195 + $0xf0] sm:%s187] %v316
                %v318 = vld [vmem:[%s194 + $0x1b4] sm:%s187]
                %319 = vst [vmem:[%s195 + $0xf4] sm:%s187] %v318
                %v320 = vld [vmem:[%s194 + $0x1b8] sm:%s187]
                %321 = vst [vmem:[%s195 + $0xf8] sm:%s187] %v320
                %v322 = vld [vmem:[%s194 + $0x1bc] sm:%s187]
                %323 = vst [vmem:[%s195 + $0xfc] sm:%s187] %v322
                %v324 = vld [vmem:[%s194 + $0x200] sm:%s187]
                %325 = vst [vmem:[%s195 + $0x100] sm:%s187] %v324
                %v326 = vld [vmem:[%s194 + $0x204] sm:%s187]
                %327 = vst [vmem:[%s195 + $0x104] sm:%s187] %v326
                %v328 = vld [vmem:[%s194 + $0x208] sm:%s187]
                %329 = vst [vmem:[%s195 + $0x108] sm:%s187] %v328
                %v330 = vld [vmem:[%s194 + $0x20c] sm:%s187]
                %331 = vst [vmem:[%s195 + $0x10c] sm:%s187] %v330
                %v332 = vld [vmem:[%s194 + $0x210] sm:%s187]
                %333 = vst [vmem:[%s195 + $0x110] sm:%s187] %v332
                %v334 = vld [vmem:[%s194 + $0x214] sm:%s187]
                %335 = vst [vmem:[%s195 + $0x114] sm:%s187] %v334
                %v336 = vld [vmem:[%s194 + $0x218] sm:%s187]
                %337 = vst [vmem:[%s195 + $0x118] sm:%s187] %v336
                %v338 = vld [vmem:[%s194 + $0x21c] sm:%s187]
                %339 = vst [vmem:[%s195 + $0x11c] sm:%s187] %v338
                %v340 = vld [vmem:[%s194 + $0x220] sm:%s187]
                %341 = vst [vmem:[%s195 + $0x120] sm:%s187] %v340
                %v342 = vld [vmem:[%s194 + $0x224] sm:%s187]
                %343 = vst [vmem:[%s195 + $0x124] sm:%s187] %v342
                %v344 = vld [vmem:[%s194 + $0x228] sm:%s187]
                %345 = vst [vmem:[%s195 + $0x128] sm:%s187] %v344
                %v346 = vld [vmem:[%s194 + $0x22c] sm:%s187]
                %347 = vst [vmem:[%s195 + $0x12c] sm:%s187] %v346
                %v348 = vld [vmem:[%s194 + $0x230] sm:%s187]
                %349 = vst [vmem:[%s195 + $0x130] sm:%s187] %v348
                %v350 = vld [vmem:[%s194 + $0x234] sm:%s187]
                %351 = vst [vmem:[%s195 + $0x134] sm:%s187] %v350
                %v352 = vld [vmem:[%s194 + $0x238] sm:%s187]
                %353 = vst [vmem:[%s195 + $0x138] sm:%s187] %v352
                %v354 = vld [vmem:[%s194 + $0x23c] sm:%s187]
                %355 = vst [vmem:[%s195 + $0x13c] sm:%s187] %v354
                %v356 = vld [vmem:[%s194 + $0x280] sm:%s187]
                %357 = vst [vmem:[%s195 + $0x140] sm:%s187] %v356
                %v358 = vld [vmem:[%s194 + $0x284] sm:%s187]
                %359 = vst [vmem:[%s195 + $0x144] sm:%s187] %v358
                %v360 = vld [vmem:[%s194 + $0x288] sm:%s187]
                %361 = vst [vmem:[%s195 + $0x148] sm:%s187] %v360
                %v362 = vld [vmem:[%s194 + $0x28c] sm:%s187]
                %363 = vst [vmem:[%s195 + $0x14c] sm:%s187] %v362
                %v364 = vld [vmem:[%s194 + $0x290] sm:%s187]
                %365 = vst [vmem:[%s195 + $0x150] sm:%s187] %v364
                %v366 = vld [vmem:[%s194 + $0x294] sm:%s187]
                %367 = vst [vmem:[%s195 + $0x154] sm:%s187] %v366
                %v368 = vld [vmem:[%s194 + $0x298] sm:%s187]
                %369 = vst [vmem:[%s195 + $0x158] sm:%s187] %v368
                %v370 = vld [vmem:[%s194 + $0x29c] sm:%s187]
                %371 = vst [vmem:[%s195 + $0x15c] sm:%s187] %v370
                %v372 = vld [vmem:[%s194 + $0x2a0] sm:%s187]
                %373 = vst [vmem:[%s195 + $0x160] sm:%s187] %v372
                %v374 = vld [vmem:[%s194 + $0x2a4] sm:%s187]
                %375 = vst [vmem:[%s195 + $0x164] sm:%s187] %v374
                %v376 = vld [vmem:[%s194 + $0x2a8] sm:%s187]
                %377 = vst [vmem:[%s195 + $0x168] sm:%s187] %v376
                %v378 = vld [vmem:[%s194 + $0x2ac] sm:%s187]
                %379 = vst [vmem:[%s195 + $0x16c] sm:%s187] %v378
                %v380 = vld [vmem:[%s194 + $0x2b0] sm:%s187]
                %381 = vst [vmem:[%s195 + $0x170] sm:%s187] %v380
                %v382 = vld [vmem:[%s194 + $0x2b4] sm:%s187]
                %383 = vst [vmem:[%s195 + $0x174] sm:%s187] %v382
                %v384 = vld [vmem:[%s194 + $0x2b8] sm:%s187]
                %385 = vst [vmem:[%s195 + $0x178] sm:%s187] %v384
                %v386 = vld [vmem:[%s194 + $0x2bc] sm:%s187]
                %387 = vst [vmem:[%s195 + $0x17c] sm:%s187] %v386
                %v388 = vld [vmem:[%s194 + $0x300] sm:%s187]
                %389 = vst [vmem:[%s195 + $0x180] sm:%s187] %v388
                %v390 = vld [vmem:[%s194 + $0x304] sm:%s187]
                %391 = vst [vmem:[%s195 + $0x184] sm:%s187] %v390
                %v392 = vld [vmem:[%s194 + $0x308] sm:%s187]
                %393 = vst [vmem:[%s195 + $0x188] sm:%s187] %v392
                %v394 = vld [vmem:[%s194 + $0x30c] sm:%s187]
                %395 = vst [vmem:[%s195 + $0x18c] sm:%s187] %v394
                %v396 = vld [vmem:[%s194 + $0x310] sm:%s187]
                %397 = vst [vmem:[%s195 + $0x190] sm:%s187] %v396
                %v398 = vld [vmem:[%s194 + $0x314] sm:%s187]
                %399 = vst [vmem:[%s195 + $0x194] sm:%s187] %v398
                %v400 = vld [vmem:[%s194 + $0x318] sm:%s187]
                %401 = vst [vmem:[%s195 + $0x198] sm:%s187] %v400
                %v402 = vld [vmem:[%s194 + $0x31c] sm:%s187]
                %403 = vst [vmem:[%s195 + $0x19c] sm:%s187] %v402
                %v404 = vld [vmem:[%s194 + $0x320] sm:%s187]
                %405 = vst [vmem:[%s195 + $0x1a0] sm:%s187] %v404
                %v406 = vld [vmem:[%s194 + $0x324] sm:%s187]
                %407 = vst [vmem:[%s195 + $0x1a4] sm:%s187] %v406
                %v408 = vld [vmem:[%s194 + $0x328] sm:%s187]
                %409 = vst [vmem:[%s195 + $0x1a8] sm:%s187] %v408
                %v410 = vld [vmem:[%s194 + $0x32c] sm:%s187]
                %411 = vst [vmem:[%s195 + $0x1ac] sm:%s187] %v410
                %v412 = vld [vmem:[%s194 + $0x330] sm:%s187]
                %413 = vst [vmem:[%s195 + $0x1b0] sm:%s187] %v412
                %v414 = vld [vmem:[%s194 + $0x334] sm:%s187]
                %415 = vst [vmem:[%s195 + $0x1b4] sm:%s187] %v414
                %v416 = vld [vmem:[%s194 + $0x338] sm:%s187]
                %417 = vst [vmem:[%s195 + $0x1b8] sm:%s187] %v416
                %v418 = vld [vmem:[%s194 + $0x33c] sm:%s187]
                %419 = vst [vmem:[%s195 + $0x1bc] sm:%s187] %v418
                %v420 = vld [vmem:[%s194 + $0x380] sm:%s187]
                %421 = vst [vmem:[%s195 + $0x1c0] sm:%s187] %v420
                %v422 = vld [vmem:[%s194 + $0x384] sm:%s187]
                %423 = vst [vmem:[%s195 + $0x1c4] sm:%s187] %v422
                %v424 = vld [vmem:[%s194 + $0x388] sm:%s187]
                %425 = vst [vmem:[%s195 + $0x1c8] sm:%s187] %v424
                %v426 = vld [vmem:[%s194 + $0x38c] sm:%s187]
                %427 = vst [vmem:[%s195 + $0x1cc] sm:%s187] %v426
                %v428 = vld [vmem:[%s194 + $0x390] sm:%s187]
                %429 = vst [vmem:[%s195 + $0x1d0] sm:%s187] %v428
                %v430 = vld [vmem:[%s194 + $0x394] sm:%s187]
                %431 = vst [vmem:[%s195 + $0x1d4] sm:%s187] %v430
                %v432 = vld [vmem:[%s194 + $0x398] sm:%s187]
                %433 = vst [vmem:[%s195 + $0x1d8] sm:%s187] %v432
                %v434 = vld [vmem:[%s194 + $0x39c] sm:%s187]
                %435 = vst [vmem:[%s195 + $0x1dc] sm:%s187] %v434
                %v436 = vld [vmem:[%s194 + $0x3a0] sm:%s187]
                %437 = vst [vmem:[%s195 + $0x1e0] sm:%s187] %v436
                %v438 = vld [vmem:[%s194 + $0x3a4] sm:%s187]
                %439 = vst [vmem:[%s195 + $0x1e4] sm:%s187] %v438
                %v440 = vld [vmem:[%s194 + $0x3a8] sm:%s187]
                %441 = vst [vmem:[%s195 + $0x1e8] sm:%s187] %v440
                %v442 = vld [vmem:[%s194 + $0x3ac] sm:%s187]
                %443 = vst [vmem:[%s195 + $0x1ec] sm:%s187] %v442
                %v444 = vld [vmem:[%s194 + $0x3b0] sm:%s187]
                %445 = vst [vmem:[%s195 + $0x1f0] sm:%s187] %v444
                %v446 = vld [vmem:[%s194 + $0x3b4] sm:%s187]
                %447 = vst [vmem:[%s195 + $0x1f4] sm:%s187] %v446
                %v448 = vld [vmem:[%s194 + $0x3b8] sm:%s187]
                %449 = vst [vmem:[%s195 + $0x1f8] sm:%s187] %v448
                %v450 = vld [vmem:[%s194 + $0x3bc] sm:%s187]
                %451 = vst [vmem:[%s195 + $0x1fc] sm:%s187] %v450
              $region49: #{_forward_impl.1} parent=43 // loop_footer
                %s193 = sadd.s32 1, %s189
              $region50: #{_forward_impl.1} parent=43 // loop_footer_branch
                %188 = sbr.rel target = $region46
              $region51: #{_forward_impl.1} parent=43 // loop_exit
                _
            $region44: #{_forward_impl.1} parent=35 // pred_fallthru
              _
          $region36: #{_forward_impl.1} parent=31 // pred_fallthru
            _
          %728 = vnop
        $region32: #{_forward_impl.1} parent=27 // pred_fallthru
          _
      $region28: #{_forward_impl.1} parent=5 // pred_fallthru
        _
      %p729 = scmp.le.s32.totalorder 1, %s10
      %p730 = scmp.lt.s32.totalorder %s10, 3
      %p731 = pnand %p729, %p730
      %p732 = pneg %p731
      // Predicated region
      $region70: #{_forward_impl.1} parent=5 // pred_check
        _
      $region71: #{_forward_impl.1} parent=5 // pred_check_branch
        %734 = sbr.rel (%p731) target = $region73
      $region72: #{_forward_impl.1} parent=5 // pred_region
        %s735 = ssub.s32 %s10, 1
        %s736 = sand.u32 %s37, 1
        %s737 = sand.u32 %s37, 1
        %s738 = smul.addr %s737, 512
        %s739 = scalar_lea.vmem [#allocation3], %s738
        // Predicated region
        $region74: #{_forward_impl.1} parent=72 // pred_check
          %p740 = pneg %p50
        $region75: #{_forward_impl.1} parent=72 // pred_check_branch
          %742 = sbr.rel (%p740) target = $region77
        $region76: #{_forward_impl.1} parent=72 // pred_region
          _
        $region77: #{_forward_impl.1} parent=72 // pred_fallthru
          _
        %s743 = sand.u32 %s37, 1
        %s744 = sand.u32 %s37, 1
        %s745 = smul.addr %s744, 512
        %s746 = scalar_lea.vmem [#allocation3], %s745
        %p747 = pneg %p50
        %p748 = pneg %p47
        %p749 = pneg %p71
        %p750 = pneg %p68
        %p751 = pneg %p92
        %p752 = pneg %p89
        %p753 = pneg %p113
        %p754 = pneg %p110
        %p755 = pneg %p139
        %p756 = pneg %p136
        %p757 = scmp.lt.s32.totalorder %s19, 0
        %s758 = scalar_select %p757, %s19, 0
        %s759 = smul.addr %s758, 3
        %s760 = smul.addr %s759, 8
        %s761 = scalar_lea.vmem %s4, %s760
        %s762 = smul.u32 8, %s19
        %s763 = smul.u32 16, %s20
        %p764 = scmp.lt.s32.totalorder %s19, 0
        %s765 = scalar_select %p764, %s19, 0
        %s766 = smul.addr %s765, 3
        %s767 = smul.addr %s766, 8
        %s768 = scalar_lea.vmem %s4, %s767
        %p770 = scmp.eq.s32.totalorder %s20, 0
        // Predicated region
        $region78: #{_forward_impl.1} parent=72 // pred_check
          %p771 = pneg %p770
        $region79: #{_forward_impl.1} parent=72 // pred_check_branch
          %773 = sbr.rel (%p771) target = $region81
        $region80: #{_forward_impl.1} parent=72 // pred_region
          %774 = vst [vmem:[#allocation2] sm:$0xff] 0.0
        $region81: #{_forward_impl.1} parent=72 // pred_fallthru
          _
        %v775 = vld [vmem:[%s739] sm:$0xf]
        %v776 = vld [vmem:[%s739 + $0x4] sm:$0xf]
        %v777 = vld [vmem:[%s739 + $0x8] sm:$0xf]
        %v778 = vld [vmem:[%s739 + $0xc] sm:$0xf]
        %v779 = vld [vmem:[%s739 + $0x10] sm:$0xf]
        %v780 = vld [vmem:[%s739 + $0x14] sm:$0xf]
        %v781 = vld [vmem:[%s739 + $0x18] sm:$0xf]
        %v782 = vld [vmem:[%s739 + $0x1c] sm:$0xf]
        %v783 = vld [vmem:[%s739 + $0x20] sm:$0xf]
        %v784 = vld [vmem:[%s739 + $0x24] sm:$0xf]
        %v785 = vld [vmem:[%s739 + $0x28] sm:$0xf]
        %v786 = vld [vmem:[%s739 + $0x2c] sm:$0xf]
        %v787 = vld [vmem:[%s739 + $0x30] sm:$0xf]
        %v788 = vld [vmem:[%s739 + $0x34] sm:$0xf]
        %v789 = vld [vmem:[%s739 + $0x38] sm:$0xf]
        %v790 = vld [vmem:[%s739 + $0x3c] sm:$0xf]
        %v791 = vld [vmem:[%s739 + $0x40] sm:$0xf]
        %v792 = vld [vmem:[%s739 + $0x44] sm:$0xf]
        %v793 = vld [vmem:[%s739 + $0x48] sm:$0xf]
        %v794 = vld [vmem:[%s739 + $0x4c] sm:$0xf]
        %v795 = vld [vmem:[%s739 + $0x50] sm:$0xf]
        %v796 = vld [vmem:[%s739 + $0x54] sm:$0xf]
        %v797 = vld [vmem:[%s739 + $0x58] sm:$0xf]
        %v798 = vld [vmem:[%s739 + $0x5c] sm:$0xf]
        %v799 = vld [vmem:[%s739 + $0x60] sm:$0xf]
        %v800 = vld [vmem:[%s739 + $0x64] sm:$0xf]
        %v801 = vld [vmem:[%s739 + $0x68] sm:$0xf]
        %v802 = vld [vmem:[%s739 + $0x6c] sm:$0xf]
        %v803 = vld [vmem:[%s739 + $0x70] sm:$0xf]
        %v804 = vld [vmem:[%s739 + $0x74] sm:$0xf]
        %v805 = vld [vmem:[%s739 + $0x78] sm:$0xf]
        %v806 = vld [vmem:[%s739 + $0x7c] sm:$0xf]
        %v807 = vld [vmem:[%s739 + $0x80] sm:$0xf]
        %v808 = vld [vmem:[%s739 + $0x84] sm:$0xf]
        %v809 = vld [vmem:[%s739 + $0x88] sm:$0xf]
        %v810 = vld [vmem:[%s739 + $0x8c] sm:$0xf]
        %v811 = vld [vmem:[%s739 + $0x90] sm:$0xf]
        %v812 = vld [vmem:[%s739 + $0x94] sm:$0xf]
        %v813 = vld [vmem:[%s739 + $0x98] sm:$0xf]
        %v814 = vld [vmem:[%s739 + $0x9c] sm:$0xf]
        %v815 = vld [vmem:[%s739 + $0xa0] sm:$0xf]
        %v816 = vld [vmem:[%s739 + $0xa4] sm:$0xf]
        %v817 = vld [vmem:[%s739 + $0xa8] sm:$0xf]
        %v818 = vld [vmem:[%s739 + $0xac] sm:$0xf]
        %v819 = vld [vmem:[%s739 + $0xb0] sm:$0xf]
        %v820 = vld [vmem:[%s739 + $0xb4] sm:$0xf]
        %v821 = vld [vmem:[%s739 + $0xb8] sm:$0xf]
        %v822 = vld [vmem:[%s739 + $0xbc] sm:$0xf]
        %v823 = vld [vmem:[%s739 + $0xc0] sm:$0xf]
        %v824 = vld [vmem:[%s739 + $0xc4] sm:$0xf]
        %v825 = vld [vmem:[%s739 + $0xc8] sm:$0xf]
        %v826 = vld [vmem:[%s739 + $0xcc] sm:$0xf]
        %v827 = vld [vmem:[%s739 + $0xd0] sm:$0xf]
        %v828 = vld [vmem:[%s739 + $0xd4] sm:$0xf]
        %v829 = vld [vmem:[%s739 + $0xd8] sm:$0xf]
        %v830 = vld [vmem:[%s739 + $0xdc] sm:$0xf]
        %v831 = vld [vmem:[%s739 + $0xe0] sm:$0xf]
        %v832 = vld [vmem:[%s739 + $0xe4] sm:$0xf]
        %v833 = vld [vmem:[%s739 + $0xe8] sm:$0xf]
        %v834 = vld [vmem:[%s739 + $0xec] sm:$0xf]
        %v835 = vld [vmem:[%s739 + $0xf0] sm:$0xf]
        %v836 = vld [vmem:[%s739 + $0xf4] sm:$0xf]
        %v837 = vld [vmem:[%s739 + $0xf8] sm:$0xf]
        %v838 = vld [vmem:[%s739 + $0xfc] sm:$0xf]
        %v839 = vld [vmem:[%s739 + $0x100] sm:$0xf]
        %v840 = vld [vmem:[%s739 + $0x104] sm:$0xf]
        %v841 = vld [vmem:[%s739 + $0x108] sm:$0xf]
        %v842 = vld [vmem:[%s739 + $0x10c] sm:$0xf]
        %v843 = vld [vmem:[%s739 + $0x110] sm:$0xf]
        %v844 = vld [vmem:[%s739 + $0x114] sm:$0xf]
        %v845 = vld [vmem:[%s739 + $0x118] sm:$0xf]
        %v846 = vld [vmem:[%s739 + $0x11c] sm:$0xf]
        %v847 = vld [vmem:[%s739 + $0x120] sm:$0xf]
        %v848 = vld [vmem:[%s739 + $0x124] sm:$0xf]
        %v849 = vld [vmem:[%s739 + $0x128] sm:$0xf]
        %v850 = vld [vmem:[%s739 + $0x12c] sm:$0xf]
        %v851 = vld [vmem:[%s739 + $0x130] sm:$0xf]
        %v852 = vld [vmem:[%s739 + $0x134] sm:$0xf]
        %v853 = vld [vmem:[%s739 + $0x138] sm:$0xf]
        %v854 = vld [vmem:[%s739 + $0x13c] sm:$0xf]
        %v855 = vld [vmem:[%s739 + $0x140] sm:$0xf]
        %v856 = vld [vmem:[%s739 + $0x144] sm:$0xf]
        %v857 = vld [vmem:[%s739 + $0x148] sm:$0xf]
        %v858 = vld [vmem:[%s739 + $0x14c] sm:$0xf]
        %v859 = vld [vmem:[%s739 + $0x150] sm:$0xf]
        %v860 = vld [vmem:[%s739 + $0x154] sm:$0xf]
        %v861 = vld [vmem:[%s739 + $0x158] sm:$0xf]
        %v862 = vld [vmem:[%s739 + $0x15c] sm:$0xf]
        %v863 = vld [vmem:[%s739 + $0x160] sm:$0xf]
        %v864 = vld [vmem:[%s739 + $0x164] sm:$0xf]
        %v865 = vld [vmem:[%s739 + $0x168] sm:$0xf]
        %v866 = vld [vmem:[%s739 + $0x16c] sm:$0xf]
        %v867 = vld [vmem:[%s739 + $0x170] sm:$0xf]
        %v868 = vld [vmem:[%s739 + $0x174] sm:$0xf]
        %v869 = vld [vmem:[%s739 + $0x178] sm:$0xf]
        %v870 = vld [vmem:[%s739 + $0x17c] sm:$0xf]
        %v871 = vld [vmem:[%s739 + $0x180] sm:$0xf]
        %v872 = vld [vmem:[%s739 + $0x184] sm:$0xf]
        %v873 = vld [vmem:[%s739 + $0x188] sm:$0xf]
        %v874 = vld [vmem:[%s739 + $0x18c] sm:$0xf]
        %v875 = vld [vmem:[%s739 + $0x190] sm:$0xf]
        %v876 = vld [vmem:[%s739 + $0x194] sm:$0xf]
        %v877 = vld [vmem:[%s739 + $0x198] sm:$0xf]
        %v878 = vld [vmem:[%s739 + $0x19c] sm:$0xf]
        %v879 = vld [vmem:[%s739 + $0x1a0] sm:$0xf]
        %v880 = vld [vmem:[%s739 + $0x1a4] sm:$0xf]
        %v881 = vld [vmem:[%s739 + $0x1a8] sm:$0xf]
        %v882 = vld [vmem:[%s739 + $0x1ac] sm:$0xf]
        %v883 = vld [vmem:[%s739 + $0x1b0] sm:$0xf]
        %v884 = vld [vmem:[%s739 + $0x1b4] sm:$0xf]
        %v885 = vld [vmem:[%s739 + $0x1b8] sm:$0xf]
        %v886 = vld [vmem:[%s739 + $0x1bc] sm:$0xf]
        %v887 = vld [vmem:[%s739 + $0x1c0] sm:$0xf]
        %v888 = vld [vmem:[%s739 + $0x1c4] sm:$0xf]
        %v889 = vld [vmem:[%s739 + $0x1c8] sm:$0xf]
        %v890 = vld [vmem:[%s739 + $0x1cc] sm:$0xf]
        %v891 = vld [vmem:[%s739 + $0x1d0] sm:$0xf]
        %v892 = vld [vmem:[%s739 + $0x1d4] sm:$0xf]
        %v893 = vld [vmem:[%s739 + $0x1d8] sm:$0xf]
        %v894 = vld [vmem:[%s739 + $0x1dc] sm:$0xf]
        %v895 = vld [vmem:[%s739 + $0x1e0] sm:$0xf]
        %v896 = vld [vmem:[%s739 + $0x1e4] sm:$0xf]
        %v897 = vld [vmem:[%s739 + $0x1e8] sm:$0xf]
        %v898 = vld [vmem:[%s739 + $0x1ec] sm:$0xf]
        %v899 = vld [vmem:[%s739 + $0x1f0] sm:$0xf]
        %v900 = vld [vmem:[%s739 + $0x1f4] sm:$0xf]
        %v901 = vld [vmem:[%s739 + $0x1f8] sm:$0xf]
        %v902 = vld [vmem:[%s739 + $0x1fc] sm:$0xf]
        %v903 = vld [vmem:[%s2] sm:$0xf]
        %v904 = vld [vmem:[%s2 + $0x4] sm:$0xf]
        %v905 = vld [vmem:[%s2 + $0x8] sm:$0xf]
        %v906 = vld [vmem:[%s2 + $0xc] sm:$0xf]
        %v907 = vld [vmem:[%s2 + $0x10] sm:$0x3]
        %v1036 = vunpack.c.l.b16 %v775
        %v1037 = vunpack.c.l.b16 %v776
        %v1038 = vunpack.c.l.b16 %v777
        %v1039 = vunpack.c.l.b16 %v778
        %v1040 = vunpack.c.l.b16 %v779
        %v1041 = vunpack.c.l.b16 %v780
        %v1042 = vunpack.c.l.b16 %v781
        %v1043 = vunpack.c.l.b16 %v782
        %v1044 = vunpack.c.l.b16 %v783
        %v1045 = vunpack.c.l.b16 %v784
        %v1046 = vunpack.c.l.b16 %v785
        %v1047 = vunpack.c.l.b16 %v786
        %v1048 = vunpack.c.l.b16 %v787
        %v1049 = vunpack.c.l.b16 %v788
        %v1050 = vunpack.c.l.b16 %v789
        %v1051 = vunpack.c.l.b16 %v790
        %v1052 = vunpack.c.l.b16 %v791
        %v1053 = vunpack.c.l.b16 %v792
        %v1054 = vunpack.c.l.b16 %v793
        %v1055 = vunpack.c.l.b16 %v794
        %v1056 = vunpack.c.l.b16 %v795
        %v1057 = vunpack.c.l.b16 %v796
        %v1058 = vunpack.c.l.b16 %v797
        %v1059 = vunpack.c.l.b16 %v798
        %v1060 = vunpack.c.l.b16 %v799
        %v1061 = vunpack.c.l.b16 %v800
        %v1062 = vunpack.c.l.b16 %v801
        %v1063 = vunpack.c.l.b16 %v802
        %v1064 = vunpack.c.l.b16 %v803
        %v1065 = vunpack.c.l.b16 %v804
        %v1066 = vunpack.c.l.b16 %v805
        %v1067 = vunpack.c.l.b16 %v806
        %v1068 = vunpack.c.l.b16 %v807
        %v1069 = vunpack.c.l.b16 %v808
        %v1070 = vunpack.c.l.b16 %v809
        %v1071 = vunpack.c.l.b16 %v810
        %v1072 = vunpack.c.l.b16 %v811
        %v1073 = vunpack.c.l.b16 %v812
        %v1074 = vunpack.c.l.b16 %v813
        %v1075 = vunpack.c.l.b16 %v814
        %v1076 = vunpack.c.l.b16 %v815
        %v1077 = vunpack.c.l.b16 %v816
        %v1078 = vunpack.c.l.b16 %v817
        %v1079 = vunpack.c.l.b16 %v818
        %v1080 = vunpack.c.l.b16 %v819
        %v1081 = vunpack.c.l.b16 %v820
        %v1082 = vunpack.c.l.b16 %v821
        %v1083 = vunpack.c.l.b16 %v822
        %v1084 = vunpack.c.l.b16 %v823
        %v1085 = vunpack.c.l.b16 %v824
        %v1086 = vunpack.c.l.b16 %v825
        %v1087 = vunpack.c.l.b16 %v826
        %v1088 = vunpack.c.l.b16 %v827
        %v1089 = vunpack.c.l.b16 %v828
        %v1090 = vunpack.c.l.b16 %v829
        %v1091 = vunpack.c.l.b16 %v830
        %v1092 = vunpack.c.l.b16 %v831
        %v1093 = vunpack.c.l.b16 %v832
        %v1094 = vunpack.c.l.b16 %v833
        %v1095 = vunpack.c.l.b16 %v834
        %v1096 = vunpack.c.l.b16 %v835
        %v1097 = vunpack.c.l.b16 %v836
        %v1098 = vunpack.c.l.b16 %v837
        %v1099 = vunpack.c.l.b16 %v838
        %v1100 = vunpack.c.l.b16 %v839
        %v1101 = vunpack.c.l.b16 %v840
        %v1102 = vunpack.c.l.b16 %v841
        %v1103 = vunpack.c.l.b16 %v842
        %v1104 = vunpack.c.l.b16 %v843
        %v1105 = vunpack.c.l.b16 %v844
        %v1106 = vunpack.c.l.b16 %v845
        %v1107 = vunpack.c.l.b16 %v846
        %v1108 = vunpack.c.l.b16 %v847
        %v1109 = vunpack.c.l.b16 %v848
        %v1110 = vunpack.c.l.b16 %v849
        %v1111 = vunpack.c.l.b16 %v850
        %v1112 = vunpack.c.l.b16 %v851
        %v1113 = vunpack.c.l.b16 %v852
        %v1114 = vunpack.c.l.b16 %v853
        %v1115 = vunpack.c.l.b16 %v854
        %v1116 = vunpack.c.l.b16 %v855
        %v1117 = vunpack.c.l.b16 %v856
        %v1118 = vunpack.c.l.b16 %v857
        %v1119 = vunpack.c.l.b16 %v858
        %v1120 = vunpack.c.l.b16 %v859
        %v1121 = vunpack.c.l.b16 %v860
        %v1122 = vunpack.c.l.b16 %v861
        %v1123 = vunpack.c.l.b16 %v862
        %v1124 = vunpack.c.l.b16 %v863
        %v1125 = vunpack.c.l.b16 %v864
        %v1126 = vunpack.c.l.b16 %v865
        %v1127 = vunpack.c.l.b16 %v866
        %v1128 = vunpack.c.l.b16 %v867
        %v1129 = vunpack.c.l.b16 %v868
        %v1130 = vunpack.c.l.b16 %v869
        %v1131 = vunpack.c.l.b16 %v870
        %v1132 = vunpack.c.l.b16 %v871
        %v1133 = vunpack.c.l.b16 %v872
        %v1134 = vunpack.c.l.b16 %v873
        %v1135 = vunpack.c.l.b16 %v874
        %v1136 = vunpack.c.l.b16 %v875
        %v1137 = vunpack.c.l.b16 %v876
        %v1138 = vunpack.c.l.b16 %v877
        %v1139 = vunpack.c.l.b16 %v878
        %v1140 = vunpack.c.l.b16 %v879
        %v1141 = vunpack.c.l.b16 %v880
        %v1142 = vunpack.c.l.b16 %v881
        %v1143 = vunpack.c.l.b16 %v882
        %v1144 = vunpack.c.l.b16 %v883
        %v1145 = vunpack.c.l.b16 %v884
        %v1146 = vunpack.c.l.b16 %v885
        %v1147 = vunpack.c.l.b16 %v886
        %v1148 = vunpack.c.l.b16 %v887
        %v1149 = vunpack.c.l.b16 %v888
        %v1150 = vunpack.c.l.b16 %v889
        %v1151 = vunpack.c.l.b16 %v890
        %v1152 = vunpack.c.l.b16 %v891
        %v1153 = vunpack.c.l.b16 %v892
        %v1154 = vunpack.c.l.b16 %v893
        %v1155 = vunpack.c.l.b16 %v894
        %v1156 = vunpack.c.l.b16 %v895
        %v1157 = vunpack.c.l.b16 %v896
        %v1158 = vunpack.c.l.b16 %v897
        %v1159 = vunpack.c.l.b16 %v898
        %v1160 = vunpack.c.l.b16 %v899
        %v1161 = vunpack.c.l.b16 %v900
        %v1162 = vunpack.c.l.b16 %v901
        %v1163 = vunpack.c.l.b16 %v902
        %v1164 = vpack.c.b16 %v1037, %v1036
        %v1165 = vpack.c.b16 %v1039, %v1038
        %v1166 = vpack.c.b16 %v1041, %v1040
        %v1167 = vpack.c.b16 %v1043, %v1042
        %v1168 = vpack.c.b16 %v1045, %v1044
        %v1169 = vpack.c.b16 %v1047, %v1046
        %v1170 = vpack.c.b16 %v1049, %v1048
        %v1171 = vpack.c.b16 %v1051, %v1050
        %v1172 = vpack.c.b16 %v1053, %v1052
        %v1173 = vpack.c.b16 %v1055, %v1054
        %v1174 = vpack.c.b16 %v1057, %v1056
        %v1175 = vpack.c.b16 %v1059, %v1058
        %v1176 = vpack.c.b16 %v1061, %v1060
        %v1177 = vpack.c.b16 %v1063, %v1062
        %v1178 = vpack.c.b16 %v1065, %v1064
        %v1179 = vpack.c.b16 %v1067, %v1066
        %v1180 = vpack.c.b16 %v1069, %v1068
        %v1181 = vpack.c.b16 %v1071, %v1070
        %v1182 = vpack.c.b16 %v1073, %v1072
        %v1183 = vpack.c.b16 %v1075, %v1074
        %v1184 = vpack.c.b16 %v1077, %v1076
        %v1185 = vpack.c.b16 %v1079, %v1078
        %v1186 = vpack.c.b16 %v1081, %v1080
        %v1187 = vpack.c.b16 %v1083, %v1082
        %v1188 = vpack.c.b16 %v1085, %v1084
        %v1189 = vpack.c.b16 %v1087, %v1086
        %v1190 = vpack.c.b16 %v1089, %v1088
        %v1191 = vpack.c.b16 %v1091, %v1090
        %v1192 = vpack.c.b16 %v1093, %v1092
        %v1193 = vpack.c.b16 %v1095, %v1094
        %v1194 = vpack.c.b16 %v1097, %v1096
        %v1195 = vpack.c.b16 %v1099, %v1098
        %v1196 = vpack.c.b16 %v1101, %v1100
        %v1197 = vpack.c.b16 %v1103, %v1102
        %v1198 = vpack.c.b16 %v1105, %v1104
        %v1199 = vpack.c.b16 %v1107, %v1106
        %v1200 = vpack.c.b16 %v1109, %v1108
        %v1201 = vpack.c.b16 %v1111, %v1110
        %v1202 = vpack.c.b16 %v1113, %v1112
        %v1203 = vpack.c.b16 %v1115, %v1114
        %v1204 = vpack.c.b16 %v1117, %v1116
        %v1205 = vpack.c.b16 %v1119, %v1118
        %v1206 = vpack.c.b16 %v1121, %v1120
        %v1207 = vpack.c.b16 %v1123, %v1122
        %v1208 = vpack.c.b16 %v1125, %v1124
        %v1209 = vpack.c.b16 %v1127, %v1126
        %v1210 = vpack.c.b16 %v1129, %v1128
        %v1211 = vpack.c.b16 %v1131, %v1130
        %v1212 = vpack.c.b16 %v1133, %v1132
        %v1213 = vpack.c.b16 %v1135, %v1134
        %v1214 = vpack.c.b16 %v1137, %v1136
        %v1215 = vpack.c.b16 %v1139, %v1138
        %v1216 = vpack.c.b16 %v1141, %v1140
        %v1217 = vpack.c.b16 %v1143, %v1142
        %v1218 = vpack.c.b16 %v1145, %v1144
        %v1219 = vpack.c.b16 %v1147, %v1146
        %v1220 = vpack.c.b16 %v1149, %v1148
        %v1221 = vpack.c.b16 %v1151, %v1150
        %v1222 = vpack.c.b16 %v1153, %v1152
        %v1223 = vpack.c.b16 %v1155, %v1154
        %v1224 = vpack.c.b16 %v1157, %v1156
        %v1225 = vpack.c.b16 %v1159, %v1158
        %v1226 = vpack.c.b16 %v1161, %v1160
        %v1227 = vpack.c.b16 %v1163, %v1162
        %v1233 = vunpack.c.l.b16 %v903
        %v1234 = vunpack.c.l.b16 %v904
        %v1235 = vunpack.c.l.b16 %v905
        %v1236 = vunpack.c.l.b16 %v906
        %v1237 = vunpack.c.l.b16 %v907
        %v1238 = vpack.c.b16 %v1234, %v1233
        %v1239 = vpack.c.b16 %v1236, %v1235
        %v1240 = vpack.c.b16 %v1237, %v1237
        %vm1243 = vcmask 293888
        %v1245 = vsel %vm1243, %v1164, 0
        %v1248 = vsel %vm1243, %v1165, 0
        %v1251 = vsel %vm1243, %v1166, 0
        %v1254 = vsel %vm1243, %v1167, 0
        %v1257 = vsel %vm1243, %v1168, 0
        %v1260 = vsel %vm1243, %v1169, 0
        %v1263 = vsel %vm1243, %v1170, 0
        %v1266 = vsel %vm1243, %v1171, 0
        %v1269 = vsel %vm1243, %v1172, 0
        %v1272 = vsel %vm1243, %v1173, 0
        %v1275 = vsel %vm1243, %v1174, 0
        %v1278 = vsel %vm1243, %v1175, 0
        %v1281 = vsel %vm1243, %v1176, 0
        %v1284 = vsel %vm1243, %v1177, 0
        %v1287 = vsel %vm1243, %v1178, 0
        %v1290 = vsel %vm1243, %v1179, 0
        %v1293 = vsel %vm1243, %v1180, 0
        %v1296 = vsel %vm1243, %v1181, 0
        %v1299 = vsel %vm1243, %v1182, 0
        %v1302 = vsel %vm1243, %v1183, 0
        %v1305 = vsel %vm1243, %v1184, 0
        %v1308 = vsel %vm1243, %v1185, 0
        %v1311 = vsel %vm1243, %v1186, 0
        %v1314 = vsel %vm1243, %v1187, 0
        %v1317 = vsel %vm1243, %v1188, 0
        %v1320 = vsel %vm1243, %v1189, 0
        %v1323 = vsel %vm1243, %v1190, 0
        %v1326 = vsel %vm1243, %v1191, 0
        %v1329 = vsel %vm1243, %v1192, 0
        %v1332 = vsel %vm1243, %v1193, 0
        %v1335 = vsel %vm1243, %v1194, 0
        %v1338 = vsel %vm1243, %v1195, 0
        %v1341 = vsel %vm1243, %v1196, 0
        %v1344 = vsel %vm1243, %v1197, 0
        %v1347 = vsel %vm1243, %v1198, 0
        %v1350 = vsel %vm1243, %v1199, 0
        %v1353 = vsel %vm1243, %v1200, 0
        %v1356 = vsel %vm1243, %v1201, 0
        %v1359 = vsel %vm1243, %v1202, 0
        %v1362 = vsel %vm1243, %v1203, 0
        %v1365 = vsel %vm1243, %v1204, 0
        %v1368 = vsel %vm1243, %v1205, 0
        %v1371 = vsel %vm1243, %v1206, 0
        %v1374 = vsel %vm1243, %v1207, 0
        %v1377 = vsel %vm1243, %v1208, 0
        %v1380 = vsel %vm1243, %v1209, 0
        %v1383 = vsel %vm1243, %v1210, 0
        %v1386 = vsel %vm1243, %v1211, 0
        %v1389 = vsel %vm1243, %v1212, 0
        %v1392 = vsel %vm1243, %v1213, 0
        %v1395 = vsel %vm1243, %v1214, 0
        %v1398 = vsel %vm1243, %v1215, 0
        %v1401 = vsel %vm1243, %v1216, 0
        %v1404 = vsel %vm1243, %v1217, 0
        %v1407 = vsel %vm1243, %v1218, 0
        %v1410 = vsel %vm1243, %v1219, 0
        %v1413 = vsel %vm1243, %v1220, 0
        %v1416 = vsel %vm1243, %v1221, 0
        %v1419 = vsel %vm1243, %v1222, 0
        %v1422 = vsel %vm1243, %v1223, 0
        %v1425 = vsel %vm1243, %v1224, 0
        %v1428 = vsel %vm1243, %v1225, 0
        %v1431 = vsel %vm1243, %v1226, 0
        %v1434 = vsel %vm1243, %v1227, 0
        %vm1436 = vcmask 1041408
        %v1438 = vsel %vm1436, %v1240, 0
        %1440 = vmatprep.subr.bf16.mxu0 0
        %1441 = vmatpush1.bf16.msra.mxu0 0
        %1442 = vmatprep.subr.bf16.mxu0 0
        %1443 = vmatpush1.bf16.msra.mxu0 0
        %1444 = vmatprep.subr.bf16.mxu0 0
        %1445 = vmatpush1.bf16.msra.mxu0 0
        %1446 = vmatprep.subr.bf16.mxu0 0
        %1447 = vmatpush1.bf16.msra.mxu0 0
        %1448 = vmatprep.subr.bf16.mxu0 0
        %1449 = vmatpush1.bf16.msra.mxu0 0
        %1450 = vmatprep.subr.bf16.mxu0 0
        %1451 = vmatpush1.bf16.msra.mxu0 %v1438
        %1452 = vmatprep.subr.bf16.mxu0 0
        %1453 = vmatpush1.bf16.msra.mxu0 %v1239
        %1454 = vmatprep.subr.bf16.mxu0 0
        %1455 = vmatpush1.bf16.msra.mxu0 %v1238
        %1456 = vmatprep.subr.bf16.mxu0 0
        %1457 = vmatpush2.bf16.msra.mxu0 0
        %1458 = vmatprep.subr.bf16.mxu0 0
        %1459 = vmatpush2.bf16.msra.mxu0 0
        %1460 = vmatprep.subr.bf16.mxu0 0
        %1461 = vmatpush2.bf16.msra.mxu0 0
        %1462 = vmatprep.subr.bf16.mxu0 0
        %1463 = vmatpush2.bf16.msra.mxu0 0
        %1464 = vmatprep.subr.bf16.mxu0 0
        %1465 = vmatpush2.bf16.msra.mxu0 0
        %1466 = vmatprep.subr.bf16.mxu0 0
        %1467 = vmatpush2.bf16.msra.mxu0 0
        %1468 = vmatprep.subr.bf16.mxu0 0
        %1469 = vmatpush2.bf16.msra.mxu0 0
        %1470 = vmatprep.subr.bf16.mxu0 0
        %1471 = vmatpush2.bf16.msra.mxu0 0
        %1472 = vmatprep.mubr.bf16.mxu0 0
        %1473 = vmatmul.mubr.bf16.gmra.mxu0 %v1245
        %v1474 = vpop.f32.mrf.mxu0
        %v1475 = vadd.f32 0.0, %v1474
        %v1476 = vpop.f32.mrf.mxu0
        %v1477 = vpop.f32.mrf.mxu0
        %v1478 = vadd.f32 0.0, %v1477
        %v1479 = vpop.f32.mrf.mxu0
        %1480 = vmatprep.mubr.bf16.mxu0 0
        %1481 = vmatmul.mubr.bf16.gmra.mxu0 %v1248
        %v1482 = vpop.f32.mrf.mxu0
        %v1483 = vadd.f32 0.0, %v1482
        %v1484 = vpop.f32.mrf.mxu0
        %v1485 = vpop.f32.mrf.mxu0
        %v1486 = vadd.f32 0.0, %v1485
        %v1487 = vpop.f32.mrf.mxu0
        %1488 = vmatprep.mubr.bf16.mxu0 0
        %1489 = vmatmul.mubr.bf16.gmra.mxu0 %v1251
        %v1490 = vpop.f32.mrf.mxu0
        %v1491 = vadd.f32 0.0, %v1490
        %v1492 = vpop.f32.mrf.mxu0
        %v1493 = vpop.f32.mrf.mxu0
        %v1494 = vadd.f32 0.0, %v1493
        %v1495 = vpop.f32.mrf.mxu0
        %1496 = vmatprep.mubr.bf16.mxu0 0
        %1497 = vmatmul.mubr.bf16.gmra.mxu0 %v1254
        %v1498 = vpop.f32.mrf.mxu0
        %v1499 = vadd.f32 0.0, %v1498
        %v1500 = vpop.f32.mrf.mxu0
        %v1501 = vpop.f32.mrf.mxu0
        %v1502 = vadd.f32 0.0, %v1501
        %v1503 = vpop.f32.mrf.mxu0
        %1504 = vmatprep.mubr.bf16.mxu0 0
        %1505 = vmatmul.mubr.bf16.gmra.mxu0 %v1257
        %v1506 = vpop.f32.mrf.mxu0
        %v1507 = vadd.f32 0.0, %v1506
        %v1508 = vpop.f32.mrf.mxu0
        %v1509 = vpop.f32.mrf.mxu0
        %v1510 = vadd.f32 0.0, %v1509
        %v1511 = vpop.f32.mrf.mxu0
        %1512 = vmatprep.mubr.bf16.mxu0 0
        %1513 = vmatmul.mubr.bf16.gmra.mxu0 %v1260
        %v1514 = vpop.f32.mrf.mxu0
        %v1515 = vadd.f32 0.0, %v1514
        %v1516 = vpop.f32.mrf.mxu0
        %v1517 = vpop.f32.mrf.mxu0
        %v1518 = vadd.f32 0.0, %v1517
        %v1519 = vpop.f32.mrf.mxu0
        %1520 = vmatprep.mubr.bf16.mxu0 0
        %1521 = vmatmul.mubr.bf16.gmra.mxu0 %v1263
        %v1522 = vpop.f32.mrf.mxu0
        %v1523 = vadd.f32 0.0, %v1522
        %v1524 = vpop.f32.mrf.mxu0
        %v1525 = vpop.f32.mrf.mxu0
        %v1526 = vadd.f32 0.0, %v1525
        %v1527 = vpop.f32.mrf.mxu0
        %1528 = vmatprep.mubr.bf16.mxu0 0
        %1529 = vmatmul.mubr.bf16.gmra.mxu0 %v1266
        %v1530 = vpop.f32.mrf.mxu0
        %v1531 = vadd.f32 0.0, %v1530
        %v1532 = vpop.f32.mrf.mxu0
        %v1533 = vpop.f32.mrf.mxu0
        %v1534 = vadd.f32 0.0, %v1533
        %v1535 = vpop.f32.mrf.mxu0
        %1536 = vmatprep.mubr.bf16.mxu0 0
        %1537 = vmatmul.mubr.bf16.gmra.mxu0 %v1269
        %v1538 = vpop.f32.mrf.mxu0
        %v1539 = vadd.f32 0.0, %v1538
        %v1540 = vpop.f32.mrf.mxu0
        %v1541 = vpop.f32.mrf.mxu0
        %v1542 = vadd.f32 0.0, %v1541
        %v1543 = vpop.f32.mrf.mxu0
        %1544 = vmatprep.mubr.bf16.mxu0 0
        %1545 = vmatmul.mubr.bf16.gmra.mxu0 %v1272
        %v1546 = vpop.f32.mrf.mxu0
        %v1547 = vadd.f32 0.0, %v1546
        %v1548 = vpop.f32.mrf.mxu0
        %v1549 = vpop.f32.mrf.mxu0
        %v1550 = vadd.f32 0.0, %v1549
        %v1551 = vpop.f32.mrf.mxu0
        %1552 = vmatprep.mubr.bf16.mxu0 0
        %1553 = vmatmul.mubr.bf16.gmra.mxu0 %v1275
        %v1554 = vpop.f32.mrf.mxu0
        %v1555 = vadd.f32 0.0, %v1554
        %v1556 = vpop.f32.mrf.mxu0
        %v1557 = vpop.f32.mrf.mxu0
        %v1558 = vadd.f32 0.0, %v1557
        %v1559 = vpop.f32.mrf.mxu0
        %1560 = vmatprep.mubr.bf16.mxu0 0
        %1561 = vmatmul.mubr.bf16.gmra.mxu0 %v1278
        %v1562 = vpop.f32.mrf.mxu0
        %v1563 = vadd.f32 0.0, %v1562
        %v1564 = vpop.f32.mrf.mxu0
        %v1565 = vpop.f32.mrf.mxu0
        %v1566 = vadd.f32 0.0, %v1565
        %v1567 = vpop.f32.mrf.mxu0
        %1568 = vmatprep.mubr.bf16.mxu0 0
        %1569 = vmatmul.mubr.bf16.gmra.mxu0 %v1281
        %v1570 = vpop.f32.mrf.mxu0
        %v1571 = vadd.f32 0.0, %v1570
        %v1572 = vpop.f32.mrf.mxu0
        %v1573 = vpop.f32.mrf.mxu0
        %v1574 = vadd.f32 0.0, %v1573
        %v1575 = vpop.f32.mrf.mxu0
        %1576 = vmatprep.mubr.bf16.mxu0 0
        %1577 = vmatmul.mubr.bf16.gmra.mxu0 %v1284
        %v1578 = vpop.f32.mrf.mxu0
        %v1579 = vadd.f32 0.0, %v1578
        %v1580 = vpop.f32.mrf.mxu0
        %v1581 = vpop.f32.mrf.mxu0
        %v1582 = vadd.f32 0.0, %v1581
        %v1583 = vpop.f32.mrf.mxu0
        %1584 = vmatprep.mubr.bf16.mxu0 0
        %1585 = vmatmul.mubr.bf16.gmra.mxu0 %v1287
        %v1586 = vpop.f32.mrf.mxu0
        %v1587 = vadd.f32 0.0, %v1586
        %v1588 = vpop.f32.mrf.mxu0
        %v1589 = vpop.f32.mrf.mxu0
        %v1590 = vadd.f32 0.0, %v1589
        %v1591 = vpop.f32.mrf.mxu0
        %1592 = vmatprep.mubr.bf16.mxu0 0
        %1593 = vmatmul.mubr.bf16.gmra.mxu0 %v1290
        %v1594 = vpop.f32.mrf.mxu0
        %v1595 = vadd.f32 0.0, %v1594
        %v1596 = vpop.f32.mrf.mxu0
        %v1597 = vpop.f32.mrf.mxu0
        %v1598 = vadd.f32 0.0, %v1597
        %v1599 = vpop.f32.mrf.mxu0
        %1600 = vmatprep.mubr.bf16.mxu0 0
        %1601 = vmatmul.mubr.bf16.gmra.mxu0 %v1293
        %v1602 = vpop.f32.mrf.mxu0
        %v1603 = vadd.f32 0.0, %v1602
        %v1604 = vpop.f32.mrf.mxu0
        %v1605 = vpop.f32.mrf.mxu0
        %v1606 = vadd.f32 0.0, %v1605
        %v1607 = vpop.f32.mrf.mxu0
        %1608 = vmatprep.mubr.bf16.mxu0 0
        %1609 = vmatmul.mubr.bf16.gmra.mxu0 %v1296
        %v1610 = vpop.f32.mrf.mxu0
        %v1611 = vadd.f32 0.0, %v1610
        %v1612 = vpop.f32.mrf.mxu0
        %v1613 = vpop.f32.mrf.mxu0
        %v1614 = vadd.f32 0.0, %v1613
        %v1615 = vpop.f32.mrf.mxu0
        %1616 = vmatprep.mubr.bf16.mxu0 0
        %1617 = vmatmul.mubr.bf16.gmra.mxu0 %v1299
        %v1618 = vpop.f32.mrf.mxu0
        %v1619 = vadd.f32 0.0, %v1618
        %v1620 = vpop.f32.mrf.mxu0
        %v1621 = vpop.f32.mrf.mxu0
        %v1622 = vadd.f32 0.0, %v1621
        %v1623 = vpop.f32.mrf.mxu0
        %1624 = vmatprep.mubr.bf16.mxu0 0
        %1625 = vmatmul.mubr.bf16.gmra.mxu0 %v1302
        %v1626 = vpop.f32.mrf.mxu0
        %v1627 = vadd.f32 0.0, %v1626
        %v1628 = vpop.f32.mrf.mxu0
        %v1629 = vpop.f32.mrf.mxu0
        %v1630 = vadd.f32 0.0, %v1629
        %v1631 = vpop.f32.mrf.mxu0
        %1632 = vmatprep.mubr.bf16.mxu0 0
        %1633 = vmatmul.mubr.bf16.gmra.mxu0 %v1305
        %v1634 = vpop.f32.mrf.mxu0
        %v1635 = vadd.f32 0.0, %v1634
        %v1636 = vpop.f32.mrf.mxu0
        %v1637 = vpop.f32.mrf.mxu0
        %v1638 = vadd.f32 0.0, %v1637
        %v1639 = vpop.f32.mrf.mxu0
        %1640 = vmatprep.mubr.bf16.mxu0 0
        %1641 = vmatmul.mubr.bf16.gmra.mxu0 %v1308
        %v1642 = vpop.f32.mrf.mxu0
        %v1643 = vadd.f32 0.0, %v1642
        %v1644 = vpop.f32.mrf.mxu0
        %v1645 = vpop.f32.mrf.mxu0
        %v1646 = vadd.f32 0.0, %v1645
        %v1647 = vpop.f32.mrf.mxu0
        %1648 = vmatprep.mubr.bf16.mxu0 0
        %1649 = vmatmul.mubr.bf16.gmra.mxu0 %v1311
        %v1650 = vpop.f32.mrf.mxu0
        %v1651 = vadd.f32 0.0, %v1650
        %v1652 = vpop.f32.mrf.mxu0
        %v1653 = vpop.f32.mrf.mxu0
        %v1654 = vadd.f32 0.0, %v1653
        %v1655 = vpop.f32.mrf.mxu0
        %1656 = vmatprep.mubr.bf16.mxu0 0
        %1657 = vmatmul.mubr.bf16.gmra.mxu0 %v1314
        %v1658 = vpop.f32.mrf.mxu0
        %v1659 = vadd.f32 0.0, %v1658
        %v1660 = vpop.f32.mrf.mxu0
        %v1661 = vpop.f32.mrf.mxu0
        %v1662 = vadd.f32 0.0, %v1661
        %v1663 = vpop.f32.mrf.mxu0
        %1664 = vmatprep.mubr.bf16.mxu0 0
        %1665 = vmatmul.mubr.bf16.gmra.mxu0 %v1317
        %v1666 = vpop.f32.mrf.mxu0
        %v1667 = vadd.f32 0.0, %v1666
        %v1668 = vpop.f32.mrf.mxu0
        %v1669 = vpop.f32.mrf.mxu0
        %v1670 = vadd.f32 0.0, %v1669
        %v1671 = vpop.f32.mrf.mxu0
        %1672 = vmatprep.mubr.bf16.mxu0 0
        %1673 = vmatmul.mubr.bf16.gmra.mxu0 %v1320
        %v1674 = vpop.f32.mrf.mxu0
        %v1675 = vadd.f32 0.0, %v1674
        %v1676 = vpop.f32.mrf.mxu0
        %v1677 = vpop.f32.mrf.mxu0
        %v1678 = vadd.f32 0.0, %v1677
        %v1679 = vpop.f32.mrf.mxu0
        %1680 = vmatprep.mubr.bf16.mxu0 0
        %1681 = vmatmul.mubr.bf16.gmra.mxu0 %v1323
        %v1682 = vpop.f32.mrf.mxu0
        %v1683 = vadd.f32 0.0, %v1682
        %v1684 = vpop.f32.mrf.mxu0
        %v1685 = vpop.f32.mrf.mxu0
        %v1686 = vadd.f32 0.0, %v1685
        %v1687 = vpop.f32.mrf.mxu0
        %1688 = vmatprep.mubr.bf16.mxu0 0
        %1689 = vmatmul.mubr.bf16.gmra.mxu0 %v1326
        %v1690 = vpop.f32.mrf.mxu0
        %v1691 = vadd.f32 0.0, %v1690
        %v1692 = vpop.f32.mrf.mxu0
        %v1693 = vpop.f32.mrf.mxu0
        %v1694 = vadd.f32 0.0, %v1693
        %v1695 = vpop.f32.mrf.mxu0
        %1696 = vmatprep.mubr.bf16.mxu0 0
        %1697 = vmatmul.mubr.bf16.gmra.mxu0 %v1329
        %v1698 = vpop.f32.mrf.mxu0
        %v1699 = vadd.f32 0.0, %v1698
        %v1700 = vpop.f32.mrf.mxu0
        %v1701 = vpop.f32.mrf.mxu0
        %v1702 = vadd.f32 0.0, %v1701
        %v1703 = vpop.f32.mrf.mxu0
        %1704 = vmatprep.mubr.bf16.mxu0 0
        %1705 = vmatmul.mubr.bf16.gmra.mxu0 %v1332
        %v1706 = vpop.f32.mrf.mxu0
        %v1707 = vadd.f32 0.0, %v1706
        %v1708 = vpop.f32.mrf.mxu0
        %v1709 = vpop.f32.mrf.mxu0
        %v1710 = vadd.f32 0.0, %v1709
        %v1711 = vpop.f32.mrf.mxu0
        %1712 = vmatprep.mubr.bf16.mxu0 0
        %1713 = vmatmul.mubr.bf16.gmra.mxu0 %v1335
        %v1714 = vpop.f32.mrf.mxu0
        %v1715 = vadd.f32 0.0, %v1714
        %v1716 = vpop.f32.mrf.mxu0
        %v1717 = vpop.f32.mrf.mxu0
        %v1718 = vadd.f32 0.0, %v1717
        %v1719 = vpop.f32.mrf.mxu0
        %1720 = vmatprep.mubr.bf16.mxu0 0
        %1721 = vmatmul.mubr.bf16.gmra.mxu0 %v1338
        %v1722 = vpop.f32.mrf.mxu0
        %v1723 = vadd.f32 0.0, %v1722
        %v1724 = vpop.f32.mrf.mxu0
        %v1725 = vpop.f32.mrf.mxu0
        %v1726 = vadd.f32 0.0, %v1725
        %v1727 = vpop.f32.mrf.mxu0
        %1728 = vmatprep.mubr.bf16.mxu0 0
        %1729 = vmatmul.mubr.bf16.gmra.mxu0 %v1341
        %v1730 = vpop.f32.mrf.mxu0
        %v1731 = vadd.f32 0.0, %v1730
        %v1732 = vpop.f32.mrf.mxu0
        %v1733 = vpop.f32.mrf.mxu0
        %v1734 = vadd.f32 0.0, %v1733
        %v1735 = vpop.f32.mrf.mxu0
        %1736 = vmatprep.mubr.bf16.mxu0 0
        %1737 = vmatmul.mubr.bf16.gmra.mxu0 %v1344
        %v1738 = vpop.f32.mrf.mxu0
        %v1739 = vadd.f32 0.0, %v1738
        %v1740 = vpop.f32.mrf.mxu0
        %v1741 = vpop.f32.mrf.mxu0
        %v1742 = vadd.f32 0.0, %v1741
        %v1743 = vpop.f32.mrf.mxu0
        %1744 = vmatprep.mubr.bf16.mxu0 0
        %1745 = vmatmul.mubr.bf16.gmra.mxu0 %v1347
        %v1746 = vpop.f32.mrf.mxu0
        %v1747 = vadd.f32 0.0, %v1746
        %v1748 = vpop.f32.mrf.mxu0
        %v1749 = vpop.f32.mrf.mxu0
        %v1750 = vadd.f32 0.0, %v1749
        %v1751 = vpop.f32.mrf.mxu0
        %1752 = vmatprep.mubr.bf16.mxu0 0
        %1753 = vmatmul.mubr.bf16.gmra.mxu0 %v1350
        %v1754 = vpop.f32.mrf.mxu0
        %v1755 = vadd.f32 0.0, %v1754
        %v1756 = vpop.f32.mrf.mxu0
        %v1757 = vpop.f32.mrf.mxu0
        %v1758 = vadd.f32 0.0, %v1757
        %v1759 = vpop.f32.mrf.mxu0
        %1760 = vmatprep.mubr.bf16.mxu0 0
        %1761 = vmatmul.mubr.bf16.gmra.mxu0 %v1353
        %v1762 = vpop.f32.mrf.mxu0
        %v1763 = vadd.f32 0.0, %v1762
        %v1764 = vpop.f32.mrf.mxu0
        %v1765 = vpop.f32.mrf.mxu0
        %v1766 = vadd.f32 0.0, %v1765
        %v1767 = vpop.f32.mrf.mxu0
        %1768 = vmatprep.mubr.bf16.mxu0 0
        %1769 = vmatmul.mubr.bf16.gmra.mxu0 %v1356
        %v1770 = vpop.f32.mrf.mxu0
        %v1771 = vadd.f32 0.0, %v1770
        %v1772 = vpop.f32.mrf.mxu0
        %v1773 = vpop.f32.mrf.mxu0
        %v1774 = vadd.f32 0.0, %v1773
        %v1775 = vpop.f32.mrf.mxu0
        %1776 = vmatprep.mubr.bf16.mxu0 0
        %1777 = vmatmul.mubr.bf16.gmra.mxu0 %v1359
        %v1778 = vpop.f32.mrf.mxu0
        %v1779 = vadd.f32 0.0, %v1778
        %v1780 = vpop.f32.mrf.mxu0
        %v1781 = vpop.f32.mrf.mxu0
        %v1782 = vadd.f32 0.0, %v1781
        %v1783 = vpop.f32.mrf.mxu0
        %1784 = vmatprep.mubr.bf16.mxu0 0
        %1785 = vmatmul.mubr.bf16.gmra.mxu0 %v1362
        %v1786 = vpop.f32.mrf.mxu0
        %v1787 = vadd.f32 0.0, %v1786
        %v1788 = vpop.f32.mrf.mxu0
        %v1789 = vpop.f32.mrf.mxu0
        %v1790 = vadd.f32 0.0, %v1789
        %v1791 = vpop.f32.mrf.mxu0
        %1792 = vmatprep.mubr.bf16.mxu0 0
        %1793 = vmatmul.mubr.bf16.gmra.mxu0 %v1365
        %v1794 = vpop.f32.mrf.mxu0
        %v1795 = vadd.f32 0.0, %v1794
        %v1796 = vpop.f32.mrf.mxu0
        %v1797 = vpop.f32.mrf.mxu0
        %v1798 = vadd.f32 0.0, %v1797
        %v1799 = vpop.f32.mrf.mxu0
        %1800 = vmatprep.mubr.bf16.mxu0 0
        %1801 = vmatmul.mubr.bf16.gmra.mxu0 %v1368
        %v1802 = vpop.f32.mrf.mxu0
        %v1803 = vadd.f32 0.0, %v1802
        %v1804 = vpop.f32.mrf.mxu0
        %v1805 = vpop.f32.mrf.mxu0
        %v1806 = vadd.f32 0.0, %v1805
        %v1807 = vpop.f32.mrf.mxu0
        %1808 = vmatprep.mubr.bf16.mxu0 0
        %1809 = vmatmul.mubr.bf16.gmra.mxu0 %v1371
        %v1810 = vpop.f32.mrf.mxu0
        %v1811 = vadd.f32 0.0, %v1810
        %v1812 = vpop.f32.mrf.mxu0
        %v1813 = vpop.f32.mrf.mxu0
        %v1814 = vadd.f32 0.0, %v1813
        %v1815 = vpop.f32.mrf.mxu0
        %1816 = vmatprep.mubr.bf16.mxu0 0
        %1817 = vmatmul.mubr.bf16.gmra.mxu0 %v1374
        %v1818 = vpop.f32.mrf.mxu0
        %v1819 = vadd.f32 0.0, %v1818
        %v1820 = vpop.f32.mrf.mxu0
        %v1821 = vpop.f32.mrf.mxu0
        %v1822 = vadd.f32 0.0, %v1821
        %v1823 = vpop.f32.mrf.mxu0
        %1824 = vmatprep.mubr.bf16.mxu0 0
        %1825 = vmatmul.mubr.bf16.gmra.mxu0 %v1377
        %v1826 = vpop.f32.mrf.mxu0
        %v1827 = vadd.f32 0.0, %v1826
        %v1828 = vpop.f32.mrf.mxu0
        %v1829 = vpop.f32.mrf.mxu0
        %v1830 = vadd.f32 0.0, %v1829
        %v1831 = vpop.f32.mrf.mxu0
        %1832 = vmatprep.mubr.bf16.mxu0 0
        %1833 = vmatmul.mubr.bf16.gmra.mxu0 %v1380
        %v1834 = vpop.f32.mrf.mxu0
        %v1835 = vadd.f32 0.0, %v1834
        %v1836 = vpop.f32.mrf.mxu0
        %v1837 = vpop.f32.mrf.mxu0
        %v1838 = vadd.f32 0.0, %v1837
        %v1839 = vpop.f32.mrf.mxu0
        %1840 = vmatprep.mubr.bf16.mxu0 0
        %1841 = vmatmul.mubr.bf16.gmra.mxu0 %v1383
        %v1842 = vpop.f32.mrf.mxu0
        %v1843 = vadd.f32 0.0, %v1842
        %v1844 = vpop.f32.mrf.mxu0
        %v1845 = vpop.f32.mrf.mxu0
        %v1846 = vadd.f32 0.0, %v1845
        %v1847 = vpop.f32.mrf.mxu0
        %1848 = vmatprep.mubr.bf16.mxu0 0
        %1849 = vmatmul.mubr.bf16.gmra.mxu0 %v1386
        %v1850 = vpop.f32.mrf.mxu0
        %v1851 = vadd.f32 0.0, %v1850
        %v1852 = vpop.f32.mrf.mxu0
        %v1853 = vpop.f32.mrf.mxu0
        %v1854 = vadd.f32 0.0, %v1853
        %v1855 = vpop.f32.mrf.mxu0
        %1856 = vmatprep.mubr.bf16.mxu0 0
        %1857 = vmatmul.mubr.bf16.gmra.mxu0 %v1389
        %v1858 = vpop.f32.mrf.mxu0
        %v1859 = vadd.f32 0.0, %v1858
        %v1860 = vpop.f32.mrf.mxu0
        %v1861 = vpop.f32.mrf.mxu0
        %v1862 = vadd.f32 0.0, %v1861
        %v1863 = vpop.f32.mrf.mxu0
        %1864 = vmatprep.mubr.bf16.mxu0 0
        %1865 = vmatmul.mubr.bf16.gmra.mxu0 %v1392
        %v1866 = vpop.f32.mrf.mxu0
        %v1867 = vadd.f32 0.0, %v1866
        %v1868 = vpop.f32.mrf.mxu0
        %v1869 = vpop.f32.mrf.mxu0
        %v1870 = vadd.f32 0.0, %v1869
        %v1871 = vpop.f32.mrf.mxu0
        %1872 = vmatprep.mubr.bf16.mxu0 0
        %1873 = vmatmul.mubr.bf16.gmra.mxu0 %v1395
        %v1874 = vpop.f32.mrf.mxu0
        %v1875 = vadd.f32 0.0, %v1874
        %v1876 = vpop.f32.mrf.mxu0
        %v1877 = vpop.f32.mrf.mxu0
        %v1878 = vadd.f32 0.0, %v1877
        %v1879 = vpop.f32.mrf.mxu0
        %1880 = vmatprep.mubr.bf16.mxu0 0
        %1881 = vmatmul.mubr.bf16.gmra.mxu0 %v1398
        %v1882 = vpop.f32.mrf.mxu0
        %v1883 = vadd.f32 0.0, %v1882
        %v1884 = vpop.f32.mrf.mxu0
        %v1885 = vpop.f32.mrf.mxu0
        %v1886 = vadd.f32 0.0, %v1885
        %v1887 = vpop.f32.mrf.mxu0
        %1888 = vmatprep.mubr.bf16.mxu0 0
        %1889 = vmatmul.mubr.bf16.gmra.mxu0 %v1401
        %v1890 = vpop.f32.mrf.mxu0
        %v1891 = vadd.f32 0.0, %v1890
        %v1892 = vpop.f32.mrf.mxu0
        %v1893 = vpop.f32.mrf.mxu0
        %v1894 = vadd.f32 0.0, %v1893
        %v1895 = vpop.f32.mrf.mxu0
        %1896 = vmatprep.mubr.bf16.mxu0 0
        %1897 = vmatmul.mubr.bf16.gmra.mxu0 %v1404
        %v1898 = vpop.f32.mrf.mxu0
        %v1899 = vadd.f32 0.0, %v1898
        %v1900 = vpop.f32.mrf.mxu0
        %v1901 = vpop.f32.mrf.mxu0
        %v1902 = vadd.f32 0.0, %v1901
        %v1903 = vpop.f32.mrf.mxu0
        %1904 = vmatprep.mubr.bf16.mxu0 0
        %1905 = vmatmul.mubr.bf16.gmra.mxu0 %v1407
        %v1906 = vpop.f32.mrf.mxu0
        %v1907 = vadd.f32 0.0, %v1906
        %v1908 = vpop.f32.mrf.mxu0
        %v1909 = vpop.f32.mrf.mxu0
        %v1910 = vadd.f32 0.0, %v1909
        %v1911 = vpop.f32.mrf.mxu0
        %1912 = vmatprep.mubr.bf16.mxu0 0
        %1913 = vmatmul.mubr.bf16.gmra.mxu0 %v1410
        %v1914 = vpop.f32.mrf.mxu0
        %v1915 = vadd.f32 0.0, %v1914
        %v1916 = vpop.f32.mrf.mxu0
        %v1917 = vpop.f32.mrf.mxu0
        %v1918 = vadd.f32 0.0, %v1917
        %v1919 = vpop.f32.mrf.mxu0
        %1920 = vmatprep.mubr.bf16.mxu0 0
        %1921 = vmatmul.mubr.bf16.gmra.mxu0 %v1413
        %v1922 = vpop.f32.mrf.mxu0
        %v1923 = vadd.f32 0.0, %v1922
        %v1924 = vpop.f32.mrf.mxu0
        %v1925 = vpop.f32.mrf.mxu0
        %v1926 = vadd.f32 0.0, %v1925
        %v1927 = vpop.f32.mrf.mxu0
        %1928 = vmatprep.mubr.bf16.mxu0 0
        %1929 = vmatmul.mubr.bf16.gmra.mxu0 %v1416
        %v1930 = vpop.f32.mrf.mxu0
        %v1931 = vadd.f32 0.0, %v1930
        %v1932 = vpop.f32.mrf.mxu0
        %v1933 = vpop.f32.mrf.mxu0
        %v1934 = vadd.f32 0.0, %v1933
        %v1935 = vpop.f32.mrf.mxu0
        %1936 = vmatprep.mubr.bf16.mxu0 0
        %1937 = vmatmul.mubr.bf16.gmra.mxu0 %v1419
        %v1938 = vpop.f32.mrf.mxu0
        %v1939 = vadd.f32 0.0, %v1938
        %v1940 = vpop.f32.mrf.mxu0
        %v1941 = vpop.f32.mrf.mxu0
        %v1942 = vadd.f32 0.0, %v1941
        %v1943 = vpop.f32.mrf.mxu0
        %1944 = vmatprep.mubr.bf16.mxu0 0
        %1945 = vmatmul.mubr.bf16.gmra.mxu0 %v1422
        %v1946 = vpop.f32.mrf.mxu0
        %v1947 = vadd.f32 0.0, %v1946
        %v1948 = vpop.f32.mrf.mxu0
        %v1949 = vpop.f32.mrf.mxu0
        %v1950 = vadd.f32 0.0, %v1949
        %v1951 = vpop.f32.mrf.mxu0
        %1952 = vmatprep.mubr.bf16.mxu0 0
        %1953 = vmatmul.mubr.bf16.gmra.mxu0 %v1425
        %v1954 = vpop.f32.mrf.mxu0
        %v1955 = vadd.f32 0.0, %v1954
        %v1956 = vpop.f32.mrf.mxu0
        %v1957 = vpop.f32.mrf.mxu0
        %v1958 = vadd.f32 0.0, %v1957
        %v1959 = vpop.f32.mrf.mxu0
        %1960 = vmatprep.mubr.bf16.mxu0 0
        %1961 = vmatmul.mubr.bf16.gmra.mxu0 %v1428
        %v1962 = vpop.f32.mrf.mxu0
        %v1963 = vadd.f32 0.0, %v1962
        %v1964 = vpop.f32.mrf.mxu0
        %v1965 = vpop.f32.mrf.mxu0
        %v1966 = vadd.f32 0.0, %v1965
        %v1967 = vpop.f32.mrf.mxu0
        %1968 = vmatprep.mubr.bf16.mxu0 0
        %1969 = vmatmul.mubr.bf16.gmra.mxu0 %v1431
        %v1970 = vpop.f32.mrf.mxu0
        %v1971 = vadd.f32 0.0, %v1970
        %v1972 = vpop.f32.mrf.mxu0
        %v1973 = vpop.f32.mrf.mxu0
        %v1974 = vadd.f32 0.0, %v1973
        %v1975 = vpop.f32.mrf.mxu0
        %1976 = vmatprep.mubr.bf16.mxu0 0
        %1977 = vmatmul.mubr.bf16.gmra.mxu0 %v1434
        %v1978 = vpop.f32.mrf.mxu0
        %v1979 = vadd.f32 0.0, %v1978
        %v1980 = vpop.f32.mrf.mxu0
        %v1981 = vpop.f32.mrf.mxu0
        %v1982 = vadd.f32 0.0, %v1981
        %v1983 = vpop.f32.mrf.mxu0
        %1984 = vdwg.mxu0
        %v1985 = vmax.f32 %v1475, 0.0
        %v1986 = vmax.f32 %v1478, 0.0
        %v1987 = vmax.f32 %v1483, 0.0
        %v1988 = vmax.f32 %v1486, 0.0
        %v1989 = vmax.f32 %v1491, 0.0
        %v1990 = vmax.f32 %v1494, 0.0
        %v1991 = vmax.f32 %v1499, 0.0
        %v1992 = vmax.f32 %v1502, 0.0
        %v1993 = vmax.f32 %v1507, 0.0
        %v1994 = vmax.f32 %v1510, 0.0
        %v1995 = vmax.f32 %v1515, 0.0
        %v1996 = vmax.f32 %v1518, 0.0
        %v1997 = vmax.f32 %v1523, 0.0
        %v1998 = vmax.f32 %v1526, 0.0
        %v1999 = vmax.f32 %v1531, 0.0
        %v2000 = vmax.f32 %v1534, 0.0
        %v2001 = vmax.f32 %v1539, 0.0
        %v2002 = vmax.f32 %v1542, 0.0
        %v2003 = vmax.f32 %v1547, 0.0
        %v2004 = vmax.f32 %v1550, 0.0
        %v2005 = vmax.f32 %v1555, 0.0
        %v2006 = vmax.f32 %v1558, 0.0
        %v2007 = vmax.f32 %v1563, 0.0
        %v2008 = vmax.f32 %v1566, 0.0
        %v2009 = vmax.f32 %v1571, 0.0
        %v2010 = vmax.f32 %v1574, 0.0
        %v2011 = vmax.f32 %v1579, 0.0
        %v2012 = vmax.f32 %v1582, 0.0
        %v2013 = vmax.f32 %v1587, 0.0
        %v2014 = vmax.f32 %v1590, 0.0
        %v2015 = vmax.f32 %v1595, 0.0
        %v2016 = vmax.f32 %v1598, 0.0
        %v2017 = vmax.f32 %v1603, 0.0
        %v2018 = vmax.f32 %v1606, 0.0
        %v2019 = vmax.f32 %v1611, 0.0
        %v2020 = vmax.f32 %v1614, 0.0
        %v2021 = vmax.f32 %v1619, 0.0
        %v2022 = vmax.f32 %v1622, 0.0
        %v2023 = vmax.f32 %v1627, 0.0
        %v2024 = vmax.f32 %v1630, 0.0
        %v2025 = vmax.f32 %v1635, 0.0
        %v2026 = vmax.f32 %v1638, 0.0
        %v2027 = vmax.f32 %v1643, 0.0
        %v2028 = vmax.f32 %v1646, 0.0
        %v2029 = vmax.f32 %v1651, 0.0
        %v2030 = vmax.f32 %v1654, 0.0
        %v2031 = vmax.f32 %v1659, 0.0
        %v2032 = vmax.f32 %v1662, 0.0
        %v2033 = vmax.f32 %v1667, 0.0
        %v2034 = vmax.f32 %v1670, 0.0
        %v2035 = vmax.f32 %v1675, 0.0
        %v2036 = vmax.f32 %v1678, 0.0
        %v2037 = vmax.f32 %v1683, 0.0
        %v2038 = vmax.f32 %v1686, 0.0
        %v2039 = vmax.f32 %v1691, 0.0
        %v2040 = vmax.f32 %v1694, 0.0
        %v2041 = vmax.f32 %v1699, 0.0
        %v2042 = vmax.f32 %v1702, 0.0
        %v2043 = vmax.f32 %v1707, 0.0
        %v2044 = vmax.f32 %v1710, 0.0
        %v2045 = vmax.f32 %v1715, 0.0
        %v2046 = vmax.f32 %v1718, 0.0
        %v2047 = vmax.f32 %v1723, 0.0
        %v2048 = vmax.f32 %v1726, 0.0
        %v2049 = vmax.f32 %v1731, 0.0
        %v2050 = vmax.f32 %v1734, 0.0
        %v2051 = vmax.f32 %v1739, 0.0
        %v2052 = vmax.f32 %v1742, 0.0
        %v2053 = vmax.f32 %v1747, 0.0
        %v2054 = vmax.f32 %v1750, 0.0
        %v2055 = vmax.f32 %v1755, 0.0
        %v2056 = vmax.f32 %v1758, 0.0
        %v2057 = vmax.f32 %v1763, 0.0
        %v2058 = vmax.f32 %v1766, 0.0
        %v2059 = vmax.f32 %v1771, 0.0
        %v2060 = vmax.f32 %v1774, 0.0
        %v2061 = vmax.f32 %v1779, 0.0
        %v2062 = vmax.f32 %v1782, 0.0
        %v2063 = vmax.f32 %v1787, 0.0
        %v2064 = vmax.f32 %v1790, 0.0
        %v2065 = vmax.f32 %v1795, 0.0
        %v2066 = vmax.f32 %v1798, 0.0
        %v2067 = vmax.f32 %v1803, 0.0
        %v2068 = vmax.f32 %v1806, 0.0
        %v2069 = vmax.f32 %v1811, 0.0
        %v2070 = vmax.f32 %v1814, 0.0
        %v2071 = vmax.f32 %v1819, 0.0
        %v2072 = vmax.f32 %v1822, 0.0
        %v2073 = vmax.f32 %v1827, 0.0
        %v2074 = vmax.f32 %v1830, 0.0
        %v2075 = vmax.f32 %v1835, 0.0
        %v2076 = vmax.f32 %v1838, 0.0
        %v2077 = vmax.f32 %v1843, 0.0
        %v2078 = vmax.f32 %v1846, 0.0
        %v2079 = vmax.f32 %v1851, 0.0
        %v2080 = vmax.f32 %v1854, 0.0
        %v2081 = vmax.f32 %v1859, 0.0
        %v2082 = vmax.f32 %v1862, 0.0
        %v2083 = vmax.f32 %v1867, 0.0
        %v2084 = vmax.f32 %v1870, 0.0
        %v2085 = vmax.f32 %v1875, 0.0
        %v2086 = vmax.f32 %v1878, 0.0
        %v2087 = vmax.f32 %v1883, 0.0
        %v2088 = vmax.f32 %v1886, 0.0
        %v2089 = vmax.f32 %v1891, 0.0
        %v2090 = vmax.f32 %v1894, 0.0
        %v2091 = vmax.f32 %v1899, 0.0
        %v2092 = vmax.f32 %v1902, 0.0
        %v2093 = vmax.f32 %v1907, 0.0
        %v2094 = vmax.f32 %v1910, 0.0
        %v2095 = vmax.f32 %v1915, 0.0
        %v2096 = vmax.f32 %v1918, 0.0
        %v2097 = vmax.f32 %v1923, 0.0
        %v2098 = vmax.f32 %v1926, 0.0
        %v2099 = vmax.f32 %v1931, 0.0
        %v2100 = vmax.f32 %v1934, 0.0
        %v2101 = vmax.f32 %v1939, 0.0
        %v2102 = vmax.f32 %v1942, 0.0
        %v2103 = vmax.f32 %v1947, 0.0
        %v2104 = vmax.f32 %v1950, 0.0
        %v2105 = vmax.f32 %v1955, 0.0
        %v2106 = vmax.f32 %v1958, 0.0
        %v2107 = vmax.f32 %v1963, 0.0
        %v2108 = vmax.f32 %v1966, 0.0
        %v2109 = vmax.f32 %v1971, 0.0
        %v2110 = vmax.f32 %v1974, 0.0
        %v2111 = vmax.f32 %v1979, 0.0
        %v2112 = vmax.f32 %v1982, 0.0
        %v2113 = vpack.c.bf16 %v1986, %v1985
        %v2114 = vpack.c.bf16 %v1988, %v1987
        %v2115 = vpack.c.bf16 %v1990, %v1989
        %v2116 = vpack.c.bf16 %v1992, %v1991
        %v2117 = vpack.c.bf16 %v1994, %v1993
        %v2118 = vpack.c.bf16 %v1996, %v1995
        %v2119 = vpack.c.bf16 %v1998, %v1997
        %v2120 = vpack.c.bf16 %v2000, %v1999
        %v2121 = vpack.c.bf16 %v2002, %v2001
        %v2122 = vpack.c.bf16 %v2004, %v2003
        %v2123 = vpack.c.bf16 %v2006, %v2005
        %v2124 = vpack.c.bf16 %v2008, %v2007
        %v2125 = vpack.c.bf16 %v2010, %v2009
        %v2126 = vpack.c.bf16 %v2012, %v2011
        %v2127 = vpack.c.bf16 %v2014, %v2013
        %v2128 = vpack.c.bf16 %v2016, %v2015
        %v2129 = vpack.c.bf16 %v2018, %v2017
        %v2130 = vpack.c.bf16 %v2020, %v2019
        %v2131 = vpack.c.bf16 %v2022, %v2021
        %v2132 = vpack.c.bf16 %v2024, %v2023
        %v2133 = vpack.c.bf16 %v2026, %v2025
        %v2134 = vpack.c.bf16 %v2028, %v2027
        %v2135 = vpack.c.bf16 %v2030, %v2029
        %v2136 = vpack.c.bf16 %v2032, %v2031
        %v2137 = vpack.c.bf16 %v2034, %v2033
        %v2138 = vpack.c.bf16 %v2036, %v2035
        %v2139 = vpack.c.bf16 %v2038, %v2037
        %v2140 = vpack.c.bf16 %v2040, %v2039
        %v2141 = vpack.c.bf16 %v2042, %v2041
        %v2142 = vpack.c.bf16 %v2044, %v2043
        %v2143 = vpack.c.bf16 %v2046, %v2045
        %v2144 = vpack.c.bf16 %v2048, %v2047
        %v2145 = vpack.c.bf16 %v2050, %v2049
        %v2146 = vpack.c.bf16 %v2052, %v2051
        %v2147 = vpack.c.bf16 %v2054, %v2053
        %v2148 = vpack.c.bf16 %v2056, %v2055
        %v2149 = vpack.c.bf16 %v2058, %v2057
        %v2150 = vpack.c.bf16 %v2060, %v2059
        %v2151 = vpack.c.bf16 %v2062, %v2061
        %v2152 = vpack.c.bf16 %v2064, %v2063
        %v2153 = vpack.c.bf16 %v2066, %v2065
        %v2154 = vpack.c.bf16 %v2068, %v2067
        %v2155 = vpack.c.bf16 %v2070, %v2069
        %v2156 = vpack.c.bf16 %v2072, %v2071
        %v2157 = vpack.c.bf16 %v2074, %v2073
        %v2158 = vpack.c.bf16 %v2076, %v2075
        %v2159 = vpack.c.bf16 %v2078, %v2077
        %v2160 = vpack.c.bf16 %v2080, %v2079
        %v2161 = vpack.c.bf16 %v2082, %v2081
        %v2162 = vpack.c.bf16 %v2084, %v2083
        %v2163 = vpack.c.bf16 %v2086, %v2085
        %v2164 = vpack.c.bf16 %v2088, %v2087
        %v2165 = vpack.c.bf16 %v2090, %v2089
        %v2166 = vpack.c.bf16 %v2092, %v2091
        %v2167 = vpack.c.bf16 %v2094, %v2093
        %v2168 = vpack.c.bf16 %v2096, %v2095
        %v2169 = vpack.c.bf16 %v2098, %v2097
        %v2170 = vpack.c.bf16 %v2100, %v2099
        %v2171 = vpack.c.bf16 %v2102, %v2101
        %v2172 = vpack.c.bf16 %v2104, %v2103
        %v2173 = vpack.c.bf16 %v2106, %v2105
        %v2174 = vpack.c.bf16 %v2108, %v2107
        %v2175 = vpack.c.bf16 %v2110, %v2109
        %v2176 = vpack.c.bf16 %v2112, %v2111
        %v2177 = vld [vmem:[#allocation2] sm:$0xff]
        %v2178 = vld [vmem:[%s1] sm:$0xff]
        %v2179 = vld [vmem:[%s1 + $0x8] sm:$0xff]
        %v2180 = vld [vmem:[%s1 + $0x10] sm:$0xff]
        %v2181 = vld [vmem:[%s1 + $0x18] sm:$0xff]
        %v2186 = vunpack.c.l.b16 %v2178
        %v2187 = vunpack.c.h.b16 %v2178
        %v2188 = vunpack.c.l.b16 %v2179
        %v2189 = vunpack.c.h.b16 %v2179
        %v2190 = vunpack.c.l.b16 %v2180
        %v2191 = vunpack.c.h.b16 %v2180
        %v2192 = vunpack.c.l.b16 %v2181
        %v2193 = vunpack.c.h.b16 %v2181
        %v2194 = vpack.c.b16 %v2186, %v2186
        %v2195 = vpack.c.b16 %v2187, %v2187
        %v2196 = vpack.c.b16 %v2188, %v2188
        %v2197 = vpack.c.b16 %v2189, %v2189
        %v2198 = vpack.c.b16 %v2190, %v2190
        %v2199 = vpack.c.b16 %v2191, %v2191
        %v2200 = vpack.c.b16 %v2192, %v2192
        %v2201 = vpack.c.b16 %v2193, %v2193
        %2210 = vmatprep.subr.bf16.mxu0 0
        %2211 = vmatpush1.bf16.msra.mxu0 %v2120
        %2212 = vmatprep.subr.bf16.mxu0 0
        %2213 = vmatpush1.bf16.msra.mxu0 %v2119
        %2214 = vmatprep.subr.bf16.mxu0 0
        %2215 = vmatpush1.bf16.msra.mxu0 %v2118
        %2216 = vmatprep.subr.bf16.mxu0 0
        %2217 = vmatpush1.bf16.msra.mxu0 %v2117
        %2218 = vmatprep.subr.bf16.mxu0 0
        %2219 = vmatpush1.bf16.msra.mxu0 %v2116
        %2220 = vmatprep.subr.bf16.mxu0 0
        %2221 = vmatpush1.bf16.msra.mxu0 %v2115
        %2222 = vmatprep.subr.bf16.mxu0 0
        %2223 = vmatpush1.bf16.msra.mxu0 %v2114
        %2224 = vmatprep.subr.bf16.mxu0 0
        %2225 = vmatpush1.bf16.msra.mxu0 %v2113
        %2226 = vmatprep.subr.bf16.mxu0 0
        %2227 = vmatpush2.bf16.msra.mxu0 %v2128
        %2228 = vmatprep.subr.bf16.mxu0 0
        %2229 = vmatpush2.bf16.msra.mxu0 %v2127
        %2230 = vmatprep.subr.bf16.mxu0 0
        %2231 = vmatpush2.bf16.msra.mxu0 %v2126
        %2232 = vmatprep.subr.bf16.mxu0 0
        %2233 = vmatpush2.bf16.msra.mxu0 %v2125
        %2234 = vmatprep.subr.bf16.mxu0 0
        %2235 = vmatpush2.bf16.msra.mxu0 %v2124
        %2236 = vmatprep.subr.bf16.mxu0 0
        %2237 = vmatpush2.bf16.msra.mxu0 %v2123
        %2238 = vmatprep.subr.bf16.mxu0 0
        %2239 = vmatpush2.bf16.msra.mxu0 %v2122
        %2240 = vmatprep.subr.bf16.mxu0 0
        %2241 = vmatpush2.bf16.msra.mxu0 %v2121
        %2242 = vmatprep.mubr.bf16.mxu0 %v2195
        %2243 = vmatmul.mubr.bf16.gmra.mxu0 %v2194
        %v2244 = vpop.f32.mrf.mxu0
        %v2245 = vadd.f32 0.0, %v2244
        %v2246 = vpop.f32.mrf.mxu0
        %v2247 = vpop.f32.mrf.mxu0
        %v2248 = vpop.f32.mrf.mxu0
        %2249 = vdwg.mxu0
        %2250 = vmatprep.subr.bf16.mxu0 0
        %2251 = vmatpush1.bf16.msra.mxu0 %v2136
        %2252 = vmatprep.subr.bf16.mxu0 0
        %2253 = vmatpush1.bf16.msra.mxu0 %v2135
        %2254 = vmatprep.subr.bf16.mxu0 0
        %2255 = vmatpush1.bf16.msra.mxu0 %v2134
        %2256 = vmatprep.subr.bf16.mxu0 0
        %2257 = vmatpush1.bf16.msra.mxu0 %v2133
        %2258 = vmatprep.subr.bf16.mxu0 0
        %2259 = vmatpush1.bf16.msra.mxu0 %v2132
        %2260 = vmatprep.subr.bf16.mxu0 0
        %2261 = vmatpush1.bf16.msra.mxu0 %v2131
        %2262 = vmatprep.subr.bf16.mxu0 0
        %2263 = vmatpush1.bf16.msra.mxu0 %v2130
        %2264 = vmatprep.subr.bf16.mxu0 0
        %2265 = vmatpush1.bf16.msra.mxu0 %v2129
        %2266 = vmatprep.subr.bf16.mxu0 0
        %2267 = vmatpush2.bf16.msra.mxu0 %v2144
        %2268 = vmatprep.subr.bf16.mxu0 0
        %2269 = vmatpush2.bf16.msra.mxu0 %v2143
        %2270 = vmatprep.subr.bf16.mxu0 0
        %2271 = vmatpush2.bf16.msra.mxu0 %v2142
        %2272 = vmatprep.subr.bf16.mxu0 0
        %2273 = vmatpush2.bf16.msra.mxu0 %v2141
        %2274 = vmatprep.subr.bf16.mxu0 0
        %2275 = vmatpush2.bf16.msra.mxu0 %v2140
        %2276 = vmatprep.subr.bf16.mxu0 0
        %2277 = vmatpush2.bf16.msra.mxu0 %v2139
        %2278 = vmatprep.subr.bf16.mxu0 0
        %2279 = vmatpush2.bf16.msra.mxu0 %v2138
        %2280 = vmatprep.subr.bf16.mxu0 0
        %2281 = vmatpush2.bf16.msra.mxu0 %v2137
        %2282 = vmatprep.mubr.bf16.mxu0 %v2197
        %2283 = vmatmul.mubr.bf16.gmra.mxu0 %v2196
        %v2284 = vpop.f32.mrf.mxu0
        %v2285 = vadd.f32 %v2245, %v2284
        %v2286 = vpop.f32.mrf.mxu0
        %v2287 = vpop.f32.mrf.mxu0
        %v2288 = vpop.f32.mrf.mxu0
        %2289 = vdwg.mxu0
        %2290 = vmatprep.subr.bf16.mxu0 0
        %2291 = vmatpush1.bf16.msra.mxu0 %v2152
        %2292 = vmatprep.subr.bf16.mxu0 0
        %2293 = vmatpush1.bf16.msra.mxu0 %v2151
        %2294 = vmatprep.subr.bf16.mxu0 0
        %2295 = vmatpush1.bf16.msra.mxu0 %v2150
        %2296 = vmatprep.subr.bf16.mxu0 0
        %2297 = vmatpush1.bf16.msra.mxu0 %v2149
        %2298 = vmatprep.subr.bf16.mxu0 0
        %2299 = vmatpush1.bf16.msra.mxu0 %v2148
        %2300 = vmatprep.subr.bf16.mxu0 0
        %2301 = vmatpush1.bf16.msra.mxu0 %v2147
        %2302 = vmatprep.subr.bf16.mxu0 0
        %2303 = vmatpush1.bf16.msra.mxu0 %v2146
        %2304 = vmatprep.subr.bf16.mxu0 0
        %2305 = vmatpush1.bf16.msra.mxu0 %v2145
        %2306 = vmatprep.subr.bf16.mxu0 0
        %2307 = vmatpush2.bf16.msra.mxu0 %v2160
        %2308 = vmatprep.subr.bf16.mxu0 0
        %2309 = vmatpush2.bf16.msra.mxu0 %v2159
        %2310 = vmatprep.subr.bf16.mxu0 0
        %2311 = vmatpush2.bf16.msra.mxu0 %v2158
        %2312 = vmatprep.subr.bf16.mxu0 0
        %2313 = vmatpush2.bf16.msra.mxu0 %v2157
        %2314 = vmatprep.subr.bf16.mxu0 0
        %2315 = vmatpush2.bf16.msra.mxu0 %v2156
        %2316 = vmatprep.subr.bf16.mxu0 0
        %2317 = vmatpush2.bf16.msra.mxu0 %v2155
        %2318 = vmatprep.subr.bf16.mxu0 0
        %2319 = vmatpush2.bf16.msra.mxu0 %v2154
        %2320 = vmatprep.subr.bf16.mxu0 0
        %2321 = vmatpush2.bf16.msra.mxu0 %v2153
        %2322 = vmatprep.mubr.bf16.mxu0 %v2199
        %2323 = vmatmul.mubr.bf16.gmra.mxu0 %v2198
        %v2324 = vpop.f32.mrf.mxu0
        %v2325 = vadd.f32 %v2285, %v2324
        %v2326 = vpop.f32.mrf.mxu0
        %v2327 = vpop.f32.mrf.mxu0
        %v2328 = vpop.f32.mrf.mxu0
        %2329 = vdwg.mxu0
        %2330 = vmatprep.subr.bf16.mxu0 0
        %2331 = vmatpush1.bf16.msra.mxu0 %v2168
        %2332 = vmatprep.subr.bf16.mxu0 0
        %2333 = vmatpush1.bf16.msra.mxu0 %v2167
        %2334 = vmatprep.subr.bf16.mxu0 0
        %2335 = vmatpush1.bf16.msra.mxu0 %v2166
        %2336 = vmatprep.subr.bf16.mxu0 0
        %2337 = vmatpush1.bf16.msra.mxu0 %v2165
        %2338 = vmatprep.subr.bf16.mxu0 0
        %2339 = vmatpush1.bf16.msra.mxu0 %v2164
        %2340 = vmatprep.subr.bf16.mxu0 0
        %2341 = vmatpush1.bf16.msra.mxu0 %v2163
        %2342 = vmatprep.subr.bf16.mxu0 0
        %2343 = vmatpush1.bf16.msra.mxu0 %v2162
        %2344 = vmatprep.subr.bf16.mxu0 0
        %2345 = vmatpush1.bf16.msra.mxu0 %v2161
        %2346 = vmatprep.subr.bf16.mxu0 0
        %2347 = vmatpush2.bf16.msra.mxu0 %v2176
        %2348 = vmatprep.subr.bf16.mxu0 0
        %2349 = vmatpush2.bf16.msra.mxu0 %v2175
        %2350 = vmatprep.subr.bf16.mxu0 0
        %2351 = vmatpush2.bf16.msra.mxu0 %v2174
        %2352 = vmatprep.subr.bf16.mxu0 0
        %2353 = vmatpush2.bf16.msra.mxu0 %v2173
        %2354 = vmatprep.subr.bf16.mxu0 0
        %2355 = vmatpush2.bf16.msra.mxu0 %v2172
        %2356 = vmatprep.subr.bf16.mxu0 0
        %2357 = vmatpush2.bf16.msra.mxu0 %v2171
        %2358 = vmatprep.subr.bf16.mxu0 0
        %2359 = vmatpush2.bf16.msra.mxu0 %v2170
        %2360 = vmatprep.subr.bf16.mxu0 0
        %2361 = vmatpush2.bf16.msra.mxu0 %v2169
        %2362 = vmatprep.mubr.bf16.mxu0 %v2201
        %2363 = vmatmul.mubr.bf16.gmra.mxu0 %v2200
        %v2364 = vpop.f32.mrf.mxu0
        %v2365 = vadd.f32 %v2325, %v2364
        %v2366 = vpop.f32.mrf.mxu0
        %v2367 = vpop.f32.mrf.mxu0
        %v2368 = vpop.f32.mrf.mxu0
        %2369 = vdwg.mxu0
        %v2370 = vadd.f32 %v2177, %v2365
        %2371 = vst [vmem:[#allocation2] sm:$0xff] %v2370
        %p2372 = scmp.eq.s32.totalorder %s20, 1
        // Predicated region
        $region82: #{_forward_impl.1} parent=72 // pred_check
          %p2373 = pneg %p2372
        $region83: #{_forward_impl.1} parent=72 // pred_check_branch
          %2375 = sbr.rel (%p2373) target = $region85
        $region84: #{_forward_impl.1} parent=72 // pred_region
          %v2376 = vld [vmem:[#allocation2] sm:$0xff]
          %v2377 = vpack.c.bf16 %v2376, %v2376
          %v2378 = vld [vmem:[%s3] sm:$0xff]
          %v2379 = vld [vmem:[%s3 + $0x8] sm:$0xf]
          %v2380 = vld [vmem:[%s3 + $0xc] sm:$0xff]
          %v2381 = vld [vmem:[%s3 + $0x14] sm:$0xf]
          %v2382 = vld [vmem:[%s3 + $0x18] sm:$0xff]
          %v2383 = vld [vmem:[%s3 + $0x20] sm:$0xf]
          %v2384 = vld [vmem:[%s3 + $0x24] sm:$0xff]
          %v2385 = vld [vmem:[%s3 + $0x2c] sm:$0xf]
          %v2386 = vld [vmem:[%s3 + $0x30] sm:$0xff]
          %v2387 = vld [vmem:[%s3 + $0x38] sm:$0xf]
          %v2388 = vld [vmem:[%s3 + $0x3c] sm:$0xff]
          %v2389 = vld [vmem:[%s3 + $0x44] sm:$0xf]
          %v2390 = vld [vmem:[%s3 + $0x48] sm:$0xff]
          %v2391 = vld [vmem:[%s3 + $0x50] sm:$0xf]
          %v2392 = vld [vmem:[%s3 + $0x54] sm:$0xff]
          %v2393 = vld [vmem:[%s3 + $0x5c] sm:$0xf]
          %v2394 = vld [vmem:[%s3 + $0x60] sm:$0xff]
          %v2395 = vld [vmem:[%s3 + $0x68] sm:$0xf]
          %v2396 = vld [vmem:[%s3 + $0x6c] sm:$0xff]
          %v2397 = vld [vmem:[%s3 + $0x74] sm:$0xf]
          %v2398 = vld [vmem:[%s3 + $0x78] sm:$0xff]
          %v2399 = vld [vmem:[%s3 + $0x80] sm:$0xf]
          %v2400 = vld [vmem:[%s3 + $0x84] sm:$0xff]
          %v2401 = vld [vmem:[%s3 + $0x8c] sm:$0xf]
          %v2402 = vld [vmem:[%s3 + $0x90] sm:$0xff]
          %v2403 = vld [vmem:[%s3 + $0x98] sm:$0xf]
          %v2404 = vld [vmem:[%s3 + $0x9c] sm:$0xff]
          %v2405 = vld [vmem:[%s3 + $0xa4] sm:$0xf]
          %v2406 = vld [vmem:[%s3 + $0xa8] sm:$0xff]
          %v2407 = vld [vmem:[%s3 + $0xb0] sm:$0xf]
          %v2408 = vld [vmem:[%s3 + $0xb4] sm:$0xff]
          %v2409 = vld [vmem:[%s3 + $0xbc] sm:$0xf]
          %v2442 = vunpack.c.l.b16 %v2378
          %v2443 = vunpack.c.h.b16 %v2378
          %v2444 = vunpack.c.l.b16 %v2379
          %v2445 = vunpack.c.l.b16 %v2380
          %v2446 = vunpack.c.h.b16 %v2380
          %v2447 = vunpack.c.l.b16 %v2381
          %v2448 = vunpack.c.l.b16 %v2382
          %v2449 = vunpack.c.h.b16 %v2382
          %v2450 = vunpack.c.l.b16 %v2383
          %v2451 = vunpack.c.l.b16 %v2384
          %v2452 = vunpack.c.h.b16 %v2384
          %v2453 = vunpack.c.l.b16 %v2385
          %v2454 = vunpack.c.l.b16 %v2386
          %v2455 = vunpack.c.h.b16 %v2386
          %v2456 = vunpack.c.l.b16 %v2387
          %v2457 = vunpack.c.l.b16 %v2388
          %v2458 = vunpack.c.h.b16 %v2388
          %v2459 = vunpack.c.l.b16 %v2389
          %v2460 = vunpack.c.l.b16 %v2390
          %v2461 = vunpack.c.h.b16 %v2390
          %v2462 = vunpack.c.l.b16 %v2391
          %v2463 = vunpack.c.l.b16 %v2392
          %v2464 = vunpack.c.h.b16 %v2392
          %v2465 = vunpack.c.l.b16 %v2393
          %v2466 = vunpack.c.l.b16 %v2394
          %v2467 = vunpack.c.h.b16 %v2394
          %v2468 = vunpack.c.l.b16 %v2395
          %v2469 = vunpack.c.l.b16 %v2396
          %v2470 = vunpack.c.h.b16 %v2396
          %v2471 = vunpack.c.l.b16 %v2397
          %v2472 = vunpack.c.l.b16 %v2398
          %v2473 = vunpack.c.h.b16 %v2398
          %v2474 = vunpack.c.l.b16 %v2399
          %v2475 = vunpack.c.l.b16 %v2400
          %v2476 = vunpack.c.h.b16 %v2400
          %v2477 = vunpack.c.l.b16 %v2401
          %v2478 = vunpack.c.l.b16 %v2402
          %v2479 = vunpack.c.h.b16 %v2402
          %v2480 = vunpack.c.l.b16 %v2403
          %v2481 = vunpack.c.l.b16 %v2404
          %v2482 = vunpack.c.h.b16 %v2404
          %v2483 = vunpack.c.l.b16 %v2405
          %v2484 = vunpack.c.l.b16 %v2406
          %v2485 = vunpack.c.h.b16 %v2406
          %v2486 = vunpack.c.l.b16 %v2407
          %v2487 = vunpack.c.l.b16 %v2408
          %v2488 = vunpack.c.h.b16 %v2408
          %v2489 = vunpack.c.l.b16 %v2409
          %v2490 = vpack.c.b16 %v2445, %v2442
          %v2491 = vpack.c.b16 %v2446, %v2443
          %v2492 = vpack.c.b16 %v2447, %v2444
          %v2493 = vpack.c.b16 %v2451, %v2448
          %v2494 = vpack.c.b16 %v2452, %v2449
          %v2495 = vpack.c.b16 %v2453, %v2450
          %v2496 = vpack.c.b16 %v2457, %v2454
          %v2497 = vpack.c.b16 %v2458, %v2455
          %v2498 = vpack.c.b16 %v2459, %v2456
          %v2499 = vpack.c.b16 %v2463, %v2460
          %v2500 = vpack.c.b16 %v2464, %v2461
          %v2501 = vpack.c.b16 %v2465, %v2462
          %v2502 = vpack.c.b16 %v2469, %v2466
          %v2503 = vpack.c.b16 %v2470, %v2467
          %v2504 = vpack.c.b16 %v2471, %v2468
          %v2505 = vpack.c.b16 %v2475, %v2472
          %v2506 = vpack.c.b16 %v2476, %v2473
          %v2507 = vpack.c.b16 %v2477, %v2474
          %v2508 = vpack.c.b16 %v2481, %v2478
          %v2509 = vpack.c.b16 %v2482, %v2479
          %v2510 = vpack.c.b16 %v2483, %v2480
          %v2511 = vpack.c.b16 %v2487, %v2484
          %v2512 = vpack.c.b16 %v2488, %v2485
          %v2513 = vpack.c.b16 %v2489, %v2486
          %2538 = vmatprep.subr.bf16.mxu0 %v2512
          %2539 = vmatpush1.bf16.msra.mxu0 %v2511
          %2540 = vmatprep.subr.bf16.mxu0 %v2509
          %2541 = vmatpush1.bf16.msra.mxu0 %v2508
          %2542 = vmatprep.subr.bf16.mxu0 %v2506
          %2543 = vmatpush1.bf16.msra.mxu0 %v2505
          %2544 = vmatprep.subr.bf16.mxu0 %v2503
          %2545 = vmatpush1.bf16.msra.mxu0 %v2502
          %2546 = vmatprep.subr.bf16.mxu0 %v2500
          %2547 = vmatpush1.bf16.msra.mxu0 %v2499
          %2548 = vmatprep.subr.bf16.mxu0 %v2497
          %2549 = vmatpush1.bf16.msra.mxu0 %v2496
          %2550 = vmatprep.subr.bf16.mxu0 %v2494
          %2551 = vmatpush1.bf16.msra.mxu0 %v2493
          %2552 = vmatprep.subr.bf16.mxu0 %v2491
          %2553 = vmatpush1.bf16.msra.mxu0 %v2490
          %2554 = vmatprep.subr.bf16.mxu0 0
          %2555 = vmatpush2.bf16.msra.mxu0 0
          %2556 = vmatprep.subr.bf16.mxu0 0
          %2557 = vmatpush2.bf16.msra.mxu0 0
          %2558 = vmatprep.subr.bf16.mxu0 0
          %2559 = vmatpush2.bf16.msra.mxu0 0
          %2560 = vmatprep.subr.bf16.mxu0 0
          %2561 = vmatpush2.bf16.msra.mxu0 0
          %2562 = vmatprep.subr.bf16.mxu0 0
          %2563 = vmatpush2.bf16.msra.mxu0 0
          %2564 = vmatprep.subr.bf16.mxu0 0
          %2565 = vmatpush2.bf16.msra.mxu0 0
          %2566 = vmatprep.subr.bf16.mxu0 0
          %2567 = vmatpush2.bf16.msra.mxu0 0
          %2568 = vmatprep.subr.bf16.mxu0 0
          %2569 = vmatpush2.bf16.msra.mxu0 0
          %2570 = vmatprep.mubr.bf16.mxu0 0
          %2571 = vmatmul.mubr.bf16.gmra.mxu0 %v2377
          %v2572 = vpop.f32.mrf.mxu0
          %v2573 = vadd.f32 0.0, %v2572
          %v2574 = vpop.f32.mrf.mxu0
          %v2575 = vadd.f32 0.0, %v2574
          %v2576 = vpop.f32.mrf.mxu0
          %v2577 = vpop.f32.mrf.mxu0
          %2578 = vdwg.mxu0
          %2579 = vmatprep.subr.bf16.mxu0 0
          %2580 = vmatpush1.bf16.msra.mxu0 %v2513
          %2581 = vmatprep.subr.bf16.mxu0 0
          %2582 = vmatpush1.bf16.msra.mxu0 %v2510
          %2583 = vmatprep.subr.bf16.mxu0 0
          %2584 = vmatpush1.bf16.msra.mxu0 %v2507
          %2585 = vmatprep.subr.bf16.mxu0 0
          %2586 = vmatpush1.bf16.msra.mxu0 %v2504
          %2587 = vmatprep.subr.bf16.mxu0 0
          %2588 = vmatpush1.bf16.msra.mxu0 %v2501
          %2589 = vmatprep.subr.bf16.mxu0 0
          %2590 = vmatpush1.bf16.msra.mxu0 %v2498
          %2591 = vmatprep.subr.bf16.mxu0 0
          %2592 = vmatpush1.bf16.msra.mxu0 %v2495
          %2593 = vmatprep.subr.bf16.mxu0 0
          %2594 = vmatpush1.bf16.msra.mxu0 %v2492
          %2595 = vmatprep.subr.bf16.mxu0 0
          %2596 = vmatpush2.bf16.msra.mxu0 0
          %2597 = vmatprep.subr.bf16.mxu0 0
          %2598 = vmatpush2.bf16.msra.mxu0 0
          %2599 = vmatprep.subr.bf16.mxu0 0
          %2600 = vmatpush2.bf16.msra.mxu0 0
          %2601 = vmatprep.subr.bf16.mxu0 0
          %2602 = vmatpush2.bf16.msra.mxu0 0
          %2603 = vmatprep.subr.bf16.mxu0 0
          %2604 = vmatpush2.bf16.msra.mxu0 0
          %2605 = vmatprep.subr.bf16.mxu0 0
          %2606 = vmatpush2.bf16.msra.mxu0 0
          %2607 = vmatprep.subr.bf16.mxu0 0
          %2608 = vmatpush2.bf16.msra.mxu0 0
          %2609 = vmatprep.subr.bf16.mxu0 0
          %2610 = vmatpush2.bf16.msra.mxu0 0
          %2611 = vmatprep.mubr.bf16.mxu0 0
          %2612 = vmatmul.mubr.bf16.gmra.mxu0 %v2377
          %v2613 = vpop.f32.mrf.mxu0
          %v2614 = vadd.f32 0.0, %v2613
          %v2615 = vpop.f32.mrf.mxu0
          %v2616 = vpop.f32.mrf.mxu0
          %v2617 = vpop.f32.mrf.mxu0
          %2618 = vdwg.mxu0
          %2619 = vst [vmem:[%s768] sm:$0xff] %v2573
          %2620 = vst [vmem:[%s768 + $0x8] sm:$0xff] %v2575
          %2621 = vst [vmem:[%s768 + $0x10] sm:$0xff] %v2614
        $region85: #{_forward_impl.1} parent=72 // pred_fallthru
          _
        %p2622 = scmp.lt.s32.totalorder %s19, 0
        %s2623 = scalar_select %p2622, %s19, 0
        %s2624 = smul.addr %s2623, 3
        %s2625 = smul.addr %s2624, 8
        %s2626 = scalar_lea.vmem %s4, %s2625
        // Predicated region
        $region86: #{_forward_impl.1} parent=72 // pred_check
          %p2627 = pneg %p136
        $region87: #{_forward_impl.1} parent=72 // pred_check_branch
          %2629 = sbr.rel (%p2627) target = $region89
        $region88: #{_forward_impl.1} parent=72 // pred_region
          _
        $region89: #{_forward_impl.1} parent=72 // pred_fallthru
          _
        // Predicated region
        $region90: #{_forward_impl.1} parent=72 // pred_check
          %p2630 = pneg %p136
        $region91: #{_forward_impl.1} parent=72 // pred_check_branch
          %2632 = sbr.rel (%p2630) target = $region93
        $region92: #{_forward_impl.1} parent=72 // pred_region
          %p2633 = scmp.lt.s32.totalorder %s19, 0
          %s2634 = scalar_select %p2633, %s19, 0
          %s2635 = smul.addr %s2634, 3
          %s2636 = smul.addr %s2635, 8
          %s2637 = scalar_lea.vmem %s4, %s2636
        $region93: #{_forward_impl.1} parent=72 // pred_fallthru
          _
      $region73: #{_forward_impl.1} parent=5 // pred_fallthru
        _
      %p2638 = scmp.le.s32.totalorder 2, %s10
      // Predicated region
      $region94: #{_forward_impl.1} parent=5 // pred_check
        %p2639 = pneg %p2638
      $region95: #{_forward_impl.1} parent=5 // pred_check_branch
        %2641 = sbr.rel (%p2639) target = $region97
      $region96: #{_forward_impl.1} parent=5 // pred_region
        %s2642 = ssub.s32 %s10, 2
      $region97: #{_forward_impl.1} parent=5 // pred_fallthru
        _
    $region6: #{_forward_impl.1} parent=1 // loop_footer
      %s14 = sadd.s32 1, %s10
    $region7: #{_forward_impl.1} parent=1 // loop_footer_branch
      %9 = sbr.rel target = $region3
    $region8: #{_forward_impl.1} parent=1 // loop_exit
      _

</llo_original>
